<compile_context>
chip_gen: v7x
topology: tpu7x:2x2x1
jax: 0.10.0
libtpu: 0.0.40
codegen_flags: <defaults>
</compile_context>

<pallas_src>
import functools

import jax
import jax.numpy as jnp
from jax import lax
from jax.experimental import pallas as pl
from jax.experimental.pallas import tpu as pltpu

_LANE = 128


def _round_up(x, m):
    return (x + m - 1) // m * m


def _pad2d(a, rows, cols):
    return jnp.pad(a, ((0, rows - a.shape[0]), (0, cols - a.shape[1])))


def _vmem_capacity_bytes():
    try:
        info = pltpu.get_tpu_info()
        cap = getattr(info, "vmem_capacity_bytes", None)
        if cap:
            return int(cap)
    except Exception:
        pass
    return 64 << 20  # conservative (v7x-sized) fallback


def _vmem_budget():
    """Returns (vmem_limit_bytes, likely_megacore) for this TPU generation."""
    cap = _vmem_capacity_bytes()
    if cap >= (112 << 20):
        # v5e / v6e: 128 MiB physical VMEM, single TensorCore per chip.
        return 100 << 20, False
    # v7x-class: 64 MiB physical per TensorCore, 2 TensorCores per chip.
    return 44 << 20, True


def _leaky_relu(x):
    # F.leaky_relu default negative_slope = 0.01 (f32 math).
    return jnp.where(x >= 0, x, 0.01 * x)


def _masked_log_softmax(logits_f32, nvalid):
    # log_softmax over the class axis; columns >= nvalid are zero padding.
    col = lax.broadcasted_iota(jnp.int32, logits_f32.shape, 1)
    valid = col < nvalid
    neg = jnp.where(valid, logits_f32, jnp.float32(-1e30))
    m = jnp.max(neg, axis=1, keepdims=True)
    s = neg - m
    e = jnp.where(valid, jnp.exp(s), jnp.float32(0.0))
    lse = jnp.log(jnp.sum(e, axis=1, keepdims=True))
    return s - lse


# ----------------------------------------------------------------------------
# Fused path: whole GCN forward in one VMEM-resident, grid-less kernel.
# ----------------------------------------------------------------------------
def _fused_gcn_kernel(x_ref, adj_ref, w1_ref, b1_ref, w2_ref, b2_ref,
                      w3_ref, b3_ref, out_ref, *, nclass):
    adj = adj_ref[...]                                                  # bf16

    # gc1 + leaky_relu
    s1 = jnp.dot(x_ref[...], w1_ref[...], preferred_element_type=jnp.float32)
    h1 = jnp.dot(adj, s1.astype(jnp.bfloat16),
                 preferred_element_type=jnp.float32) + b1_ref[...]
    h1 = _leaky_relu(h1)

    # gc2 + leaky_relu
    s2 = jnp.dot(h1.astype(jnp.bfloat16), w2_ref[...],
                 preferred_element_type=jnp.float32)
    h2 = jnp.dot(adj, s2.astype(jnp.bfloat16),
                 preferred_element_type=jnp.float32) + b2_ref[...]
    h2 = _leaky_relu(h2)

    # gc3 + log_softmax(dim=1)
    s3 = jnp.dot(h2.astype(jnp.bfloat16), w3_ref[...],
                 preferred_element_type=jnp.float32)
    h3 = jnp.dot(adj, s3.astype(jnp.bfloat16),
                 preferred_element_type=jnp.float32) + b3_ref[...]
    out_ref[...] = _masked_log_softmax(h3, nclass).astype(out_ref.dtype)


def _fused_forward(x_bf, adj_bf, padded_params, nclass, vmem_limit):
    (w1, b1), (w2, b2), (w3, b3) = padded_params
    n, fin = x_bf.shape
    h1p, h2p, c_pad = w1.shape[1], w2.shape[1], w3.shape[1]

    flops = 2 * n * (fin * h1p + n * h1p + h1p * h2p + n * h2p
                     + h2p * c_pad + n * c_pad)
    bytes_accessed = (2 * n * n + 2 * n * fin + 4 * n * c_pad
                      + 2 * (fin * h1p + h1p * h2p + h2p * c_pad)
                      + 4 * (h1p + h2p + c_pad))

    kernel = functools.partial(_fused_gcn_kernel, nclass=nclass)
    # No grid: every operand is a single whole-array VMEM block -> no pipeline,
    # hence no double-buffering (adj is held once, not twice).
    return pl.pallas_call(
        kernel,
        out_shape=jax.ShapeDtypeStruct((n, c_pad), jnp.float32),
        compiler_params=pltpu.CompilerParams(vmem_limit_bytes=vmem_limit),
        cost_estimate=pl.CostEstimate(flops=int(flops),
                                      transcendentals=int(n * c_pad),
                                      bytes_accessed=int(bytes_accessed)),
    )(x_bf, adj_bf, w1, b1, w2, b2, w3, b3)


# ----------------------------------------------------------------------------
# Tiled path: per-layer, (row-block x K-block) tiled over the adjacency.
# ----------------------------------------------------------------------------
def _xw_kernel(x_ref, w_ref, out_ref):
    # support = X @ W, computed exactly once per layer (hoisted out of adj loop).
    out_ref[...] = jnp.dot(
        x_ref[...], w_ref[...], preferred_element_type=jnp.float32
    ).astype(out_ref.dtype)


def _propagate_kernel(adj_ref, support_ref, b_ref, out_ref, acc_ref, *,
                      activation, nvalid):
    k = pl.program_id(1)

    @pl.when(k == 0)
    def _():
        acc_ref[...] = jnp.zeros_like(acc_ref)

    acc_ref[...] += jnp.dot(adj_ref[...], support_ref[...],
                            preferred_element_type=jnp.float32)

    @pl.when(k == pl.num_programs(1) - 1)
    def _():
        out = acc_ref[...] + b_ref[...]
        if activation == "leaky_relu":
            out = _leaky_relu(out)
        elif activation == "log_softmax":
            out = _masked_log_softmax(out, nvalid)
        out_ref[...] = out.astype(out_ref.dtype)


def _gcn_layer_tiled(x, adj, w, b, *, activation, tm, tk, vmem_limit,
                     nvalid=None, out_dtype=jnp.float32):
    n, fin = x.shape
    fout = w.shape[1]

    # Step 1: support = X @ W (row-tiled; weight block index is constant and
    # small, so its second pipeline buffer is negligible VMEM).
    support = pl.pallas_call(
        _xw_kernel,
        out_shape=jax.ShapeDtypeStruct((n, fout), jnp.bfloat16),
        grid_spec=pltpu.PrefetchScalarGridSpec(
            num_scalar_prefetch=0,
            grid=(n // tm,),
            in_specs=[
                pl.BlockSpec((tm, fin), lambda i: (i, 0)),
                pl.BlockSpec((fin, fout), lambda i: (0, 0)),
            ],
            out_specs=pl.BlockSpec((tm, fout), lambda i: (i, 0)),
        ),
        compiler_params=pltpu.CompilerParams(
            dimension_semantics=("parallel",),
            vmem_limit_bytes=vmem_limit),
        cost_estimate=pl.CostEstimate(
            flops=int(2 * n * fin * fout), transcendentals=0,
            bytes_accessed=int(2 * (n * fin + fin * fout + n * fout))),
    )(x, w)

    # Step 2: out = adj @ support + b with fused activation.
    # Row blocks are 'parallel' (megacore), K blocks are last / 'arbitrary'
    # with an f32 VMEM accumulator (init at k==0, finalize at k==last).
    kernel = functools.partial(_propagate_kernel, activation=activation,
                               nvalid=nvalid)
    out_bytes = n * fout * jnp.dtype(out_dtype).itemsize
    return pl.pallas_call(
        kernel,
        out_shape=jax.ShapeDtypeStruct((n, fout), out_dtype),
        grid_spec=pltpu.PrefetchScalarGridSpec(
            num_scalar_prefetch=0,
            grid=(n // tm, n // tk),
            in_specs=[
                pl.BlockSpec((tm, tk), lambda i, k: (i, k)),    # adj block
                pl.BlockSpec((tk, fout), lambda i, k: (k, 0)),  # support K-slab
                pl.BlockSpec((1, fout), lambda i, k: (0, 0)),   # bias (tiny)
            ],
            out_specs=pl.BlockSpec((tm, fout), lambda i, k: (i, 0)),
            scratch_shapes=[pltpu.VMEM((tm, fout), jnp.float32)],
        ),
        compiler_params=pltpu.CompilerParams(
            dimension_semantics=("parallel", "arbitrary"),
            vmem_limit_bytes=vmem_limit),
        cost_estimate=pl.CostEstimate(
            flops=int(2 * n * n * fout),
            transcendentals=int(n * fout if activation == "log_softmax" else 0),
            bytes_accessed=int(2 * n * n + 2 * n * fout + 4 * fout + out_bytes)),
    )(adj, support, b)


def _tiled_forward(x_bf, adj_bf, padded_params, nclass, tm, tk, vmem_limit):
    (w1, b1), (w2, b2), (w3, b3) = padded_params
    h1 = _gcn_layer_tiled(x_bf, adj_bf, w1, b1, activation="leaky_relu",
                          out_dtype=jnp.bfloat16, tm=tm, tk=tk,
                          vmem_limit=vmem_limit)
    h2 = _gcn_layer_tiled(h1, adj_bf, w2, b2, activation="leaky_relu",
                          out_dtype=jnp.bfloat16, tm=tm, tk=tk,
                          vmem_limit=vmem_limit)
    h3 = _gcn_layer_tiled(h2, adj_bf, w3, b3, activation="log_softmax",
                          nvalid=nclass, out_dtype=jnp.float32, tm=tm, tk=tk,
                          vmem_limit=vmem_limit)
    return h3


# ----------------------------------------------------------------------------
# Wrapper
# ----------------------------------------------------------------------------
def _pad_params(params, fin_pad):
    """Zero-pad weights/biases so every layer width is a multiple of 128 lanes.
    Padding is exact: padded hidden units stay identically zero."""
    (w1, b1), (w2, b2), (w3, b3) = params
    h1p = _round_up(w1.shape[1], _LANE)
    h2p = _round_up(w2.shape[1], _LANE)
    cp = _round_up(w3.shape[1], _LANE)
    w1p = _pad2d(w1, fin_pad, h1p).astype(jnp.bfloat16)
    w2p = _pad2d(w2, h1p, h2p).astype(jnp.bfloat16)
    w3p = _pad2d(w3, h2p, cp).astype(jnp.bfloat16)
    b1p = _pad2d(b1, 1, h1p).astype(jnp.float32)
    b2p = _pad2d(b2, 1, h2p).astype(jnp.float32)
    b3p = _pad2d(b3, 1, cp).astype(jnp.float32)
    return (w1p, b1p), (w2p, b2p), (w3p, b3p)


def _choose_tiles(n, vmem_limit):
    # Bigger row tile on 128 MiB-VMEM parts (v5e/v6e); 256 on v7x (K-tiled).
    tm = 512 if vmem_limit >= (96 << 20) else 256
    n_pad = _round_up(n, tm)
    tk = tm
    for cand in (2048, 1024, 512, 256):
        if cand >= tm and n_pad % cand == 0:
            tk = cand
            break
    return tm, tk, n_pad


def gcn_forward(x, adj, params, *, fused=None):
    """GCN.forward: gc1 -> leaky_relu -> (dropout) -> gc2 -> leaky_relu
    -> (dropout) -> gc3 -> log_softmax(dim=1). Dropout = identity (eval)."""
    n, nfeat = x.shape
    nclass = params[2][0].shape[1]
    fin_pad = _round_up(nfeat, _LANE)
    padded = _pad_params(params, fin_pad)
    c_pad = padded[2][0].shape[1]

    vmem_limit, megacore = _vmem_budget()

    if fused is None:
        n128 = _round_up(n, _LANE)
        # Single-buffered fused footprint: adj + x + output + weights + a few
        # live f32 (N x 128) intermediates.
        est = (2 * n128 * n128 + 2 * n128 * fin_pad + 4 * n128 * c_pad
               + 2 * (fin_pad * _LANE + _LANE * _LANE + _LANE * c_pad)
               + 6 * 4 * n128 * _LANE)
        fused = est < int(0.7 * vmem_limit)
        # On v7x the grid-less fused launch runs on one of the two TensorCores;
        # prefer the 'parallel' row-block tiled path for non-tiny graphs.
        if megacore and n128 > 2048:
            fused = False

    if fused:
        n_pad = _round_up(n, _LANE)
        x_bf = _pad2d(x, n_pad, fin_pad).astype(jnp.bfloat16)
        adj_bf = _pad2d(adj, n_pad, n_pad).astype(jnp.bfloat16)
        out_pad = _fused_forward(x_bf, adj_bf, padded, nclass, vmem_limit)
    else:
        tm, tk, n_pad = _choose_tiles(n, vmem_limit)
        x_bf = _pad2d(x, n_pad, fin_pad).astype(jnp.bfloat16)
        adj_bf = _pad2d(adj, n_pad, n_pad).astype(jnp.bfloat16)
        out_pad = _tiled_forward(x_bf, adj_bf, padded, nclass, tm, tk,
                                 vmem_limit)
    return out_pad[:n, :nclass]


def gcn_reference(x, adj, params):
    """Pure-JAX f32 reference of the PyTorch forward (eval mode)."""
    (w1, b1), (w2, b2), (w3, b3) = params
    h = adj @ (x @ w1) + b1
    h = jnp.where(h >= 0, h, 0.01 * h)
    h = adj @ (h @ w2) + b2
    h = jnp.where(h >= 0, h, 0.01 * h)
    h = adj @ (h @ w3) + b3
    return jax.nn.log_softmax(h, axis=1)


def init_gc_params(key, fin, fout):
    # pygcn GraphConvolution.reset_parameters: uniform(-stdv, stdv),
    # stdv = 1 / sqrt(out_features), for both weight and bias.
    stdv = 1.0 / jnp.sqrt(jnp.float32(fout))
    kw, kb = jax.random.split(key)
    w = jax.random.uniform(kw, (fin, fout), jnp.float32, -stdv, stdv)
    b = jax.random.uniform(kb, (1, fout), jnp.float32, -stdv, stdv)
    return w, b


if __name__ == "__main__":
    # Small synthetic problem: N nodes, nfeat features, GCN(nfeat, nhid, nclass).
    N, nfeat, nhid, nclass = 128, 32, 32, 8

    key = jax.random.PRNGKey(0)
    kx, kadj, k1, k2, k3 = jax.random.split(key, 5)

    x = jax.random.normal(kx, (N, nfeat), dtype=jnp.float32)

    # Dense row-normalized adjacency with self-loops (stand-in for pygcn's
    # normalized sparse adj).
    a = (jax.random.uniform(kadj, (N, N)) < 0.05).astype(jnp.float32)
    a = jnp.maximum(a, a.T) + jnp.eye(N, dtype=jnp.float32)
    adj = a / jnp.sum(a, axis=1, keepdims=True)

    params = (
        init_gc_params(k1, nfeat, 16),     # gc1: nfeat -> 16
        init_gc_params(k2, 16, nhid),      # gc2: 16 -> nhid
        init_gc_params(k3, nhid, nclass),  # gc3: nhid -> nclass
    )

    out_fused = gcn_forward(x, adj, params, fused=True)    # grid-less fused
    out_tiled = gcn_forward(x, adj, params, fused=False)   # K-tiled path
    out_auto = gcn_forward(x, adj, params)                  # heuristic path
    ref = gcn_reference(x, adj, params)
    jax.block_until_ready((out_fused, out_tiled, out_auto, ref))

    assert out_fused.shape == (N, nclass)
    assert out_tiled.shape == (N, nclass)
    assert out_auto.shape == (N, nclass)
    # log_softmax rows should sum (in prob space) to ~1.
    assert jnp.allclose(jnp.sum(jnp.exp(out_fused), axis=1), 1.0, atol=1e-3)
    assert jnp.allclose(jnp.sum(jnp.exp(out_tiled), axis=1), 1.0, atol=1e-3)
    # bf16 matmuls vs f32 reference.
    assert jnp.max(jnp.abs(out_fused - ref)) < 0.1
    assert jnp.max(jnp.abs(out_tiled - ref)) < 0.1
    assert jnp.max(jnp.abs(out_auto - ref)) < 0.1

    print("KERNEL_OK")
</pallas_src>

<mosaic_0001>
module attributes {stable_mosaic.version = 11 : i64} {
  func.func @_fused_gcn_kernel(%arg0: memref<128x128xbf16, #tpu.memory_space<vmem>>, %arg1: memref<128x128xbf16, #tpu.memory_space<vmem>>, %arg2: memref<128x128xbf16, #tpu.memory_space<vmem>>, %arg3: memref<1x128xf32, #tpu.memory_space<vmem>>, %arg4: memref<128x128xbf16, #tpu.memory_space<vmem>>, %arg5: memref<1x128xf32, #tpu.memory_space<vmem>>, %arg6: memref<128x128xbf16, #tpu.memory_space<vmem>>, %arg7: memref<1x128xf32, #tpu.memory_space<vmem>>, %arg8: memref<128x128xf32, #tpu.memory_space<vmem>>) attributes {dimension_semantics = [], scalar_prefetch = 0 : i64, scratch_operands = 0 : i64, tpu.core_type = #tpu.core_type<tc>} {
    %c0 = arith.constant 0 : index
    %c0_0 = arith.constant 0 : index
    %0 = vector.load %arg1[%c0, %c0_0] : memref<128x128xbf16, #tpu.memory_space<vmem>>, vector<128x128xbf16>
    %c0_1 = arith.constant 0 : index
    %c0_2 = arith.constant 0 : index
    %1 = vector.load %arg0[%c0_1, %c0_2] : memref<128x128xbf16, #tpu.memory_space<vmem>>, vector<128x128xbf16>
    %c0_3 = arith.constant 0 : index
    %c0_4 = arith.constant 0 : index
    %2 = vector.load %arg2[%c0_3, %c0_4] : memref<128x128xbf16, #tpu.memory_space<vmem>>, vector<128x128xbf16>
    %cst = arith.constant dense<0.000000e+00> : vector<128x128xf32>
    %3 = tpu.matmul %1, %2, %cst {dimension_numbers = #tpu.dot_dimension_numbers<[1], [0], [0], [1], [0, 0, 1, 1], [], []>} : vector<128x128xbf16>, vector<128x128xbf16>, vector<128x128xf32> -> vector<128x128xf32>
    %4 = arith.truncf %3 : vector<128x128xf32> to vector<128x128xbf16>
    %cst_5 = arith.constant dense<0.000000e+00> : vector<128x128xf32>
    %5 = tpu.matmul %0, %4, %cst_5 {dimension_numbers = #tpu.dot_dimension_numbers<[1], [0], [0], [1], [0, 0, 1, 1], [], []>} : vector<128x128xbf16>, vector<128x128xbf16>, vector<128x128xf32> -> vector<128x128xf32>
    %c0_6 = arith.constant 0 : index
    %c0_7 = arith.constant 0 : index
    %6 = vector.load %arg3[%c0_6, %c0_7] : memref<1x128xf32, #tpu.memory_space<vmem>>, vector<1x128xf32>
    %7 = vector.broadcast %6 : vector<1x128xf32> to vector<128x128xf32>
    %8 = arith.addf %5, %7 : vector<128x128xf32>
    %cst_8 = arith.constant 0.000000e+00 : f32
    %9 = vector.broadcast %cst_8 : f32 to vector<128x128xf32>
    %10 = arith.cmpf oge, %8, %9 : vector<128x128xf32>
    %cst_9 = arith.constant 0.00999999977 : f32
    %11 = vector.broadcast %cst_9 : f32 to vector<128x128xf32>
    %12 = arith.mulf %11, %8 : vector<128x128xf32>
    %13 = arith.select %10, %8, %12 : vector<128x128xi1>, vector<128x128xf32>
    %14 = arith.truncf %13 : vector<128x128xf32> to vector<128x128xbf16>
    %c0_10 = arith.constant 0 : index
    %c0_11 = arith.constant 0 : index
    %15 = vector.load %arg4[%c0_10, %c0_11] : memref<128x128xbf16, #tpu.memory_space<vmem>>, vector<128x128xbf16>
    %cst_12 = arith.constant dense<0.000000e+00> : vector<128x128xf32>
    %16 = tpu.matmul %14, %15, %cst_12 {dimension_numbers = #tpu.dot_dimension_numbers<[1], [0], [0], [1], [0, 0, 1, 1], [], []>} : vector<128x128xbf16>, vector<128x128xbf16>, vector<128x128xf32> -> vector<128x128xf32>
    %17 = arith.truncf %16 : vector<128x128xf32> to vector<128x128xbf16>
    %cst_13 = arith.constant dense<0.000000e+00> : vector<128x128xf32>
    %18 = tpu.matmul %0, %17, %cst_13 {dimension_numbers = #tpu.dot_dimension_numbers<[1], [0], [0], [1], [0, 0, 1, 1], [], []>} : vector<128x128xbf16>, vector<128x128xbf16>, vector<128x128xf32> -> vector<128x128xf32>
    %c0_14 = arith.constant 0 : index
    %c0_15 = arith.constant 0 : index
    %19 = vector.load %arg5[%c0_14, %c0_15] : memref<1x128xf32, #tpu.memory_space<vmem>>, vector<1x128xf32>
    %20 = vector.broadcast %19 : vector<1x128xf32> to vector<128x128xf32>
    %21 = arith.addf %18, %20 : vector<128x128xf32>
    %cst_16 = arith.constant 0.000000e+00 : f32
    %22 = vector.broadcast %cst_16 : f32 to vector<128x128xf32>
    %23 = arith.cmpf oge, %21, %22 : vector<128x128xf32>
    %cst_17 = arith.constant 0.00999999977 : f32
    %24 = vector.broadcast %cst_17 : f32 to vector<128x128xf32>
    %25 = arith.mulf %24, %21 : vector<128x128xf32>
    %26 = arith.select %23, %21, %25 : vector<128x128xi1>, vector<128x128xf32>
    %27 = arith.truncf %26 : vector<128x128xf32> to vector<128x128xbf16>
    %c0_18 = arith.constant 0 : index
    %c0_19 = arith.constant 0 : index
    %28 = vector.load %arg6[%c0_18, %c0_19] : memref<128x128xbf16, #tpu.memory_space<vmem>>, vector<128x128xbf16>
    %cst_20 = arith.constant dense<0.000000e+00> : vector<128x128xf32>
    %29 = tpu.matmul %27, %28, %cst_20 {dimension_numbers = #tpu.dot_dimension_numbers<[1], [0], [0], [1], [0, 0, 1, 1], [], []>} : vector<128x128xbf16>, vector<128x128xbf16>, vector<128x128xf32> -> vector<128x128xf32>
    %30 = arith.truncf %29 : vector<128x128xf32> to vector<128x128xbf16>
    %cst_21 = arith.constant dense<0.000000e+00> : vector<128x128xf32>
    %31 = tpu.matmul %0, %30, %cst_21 {dimension_numbers = #tpu.dot_dimension_numbers<[1], [0], [0], [1], [0, 0, 1, 1], [], []>} : vector<128x128xbf16>, vector<128x128xbf16>, vector<128x128xf32> -> vector<128x128xf32>
    %c0_22 = arith.constant 0 : index
    %c0_23 = arith.constant 0 : index
    %32 = vector.load %arg7[%c0_22, %c0_23] : memref<1x128xf32, #tpu.memory_space<vmem>>, vector<1x128xf32>
    %33 = vector.broadcast %32 : vector<1x128xf32> to vector<128x128xf32>
    %34 = arith.addf %31, %33 : vector<128x128xf32>
    %35 = tpu.iota {dimensions = array<i32: 1>} : vector<128x128xi32>
    %c8_i32 = arith.constant 8 : i32
    %36 = vector.broadcast %c8_i32 : i32 to vector<128x128xi32>
    %37 = arith.cmpi slt, %35, %36 : vector<128x128xi32>
    %cst_24 = arith.constant -1.000000e+30 : f32
    %38 = vector.broadcast %cst_24 : f32 to vector<128x128xf32>
    %39 = arith.select %37, %34, %38 : vector<128x128xi1>, vector<128x128xf32>
    %cst_25 = arith.constant dense<0xFF800000> : vector<128xf32>
    %40 = vector.multi_reduction <maximumf>, %39, %cst_25 [1] : vector<128x128xf32> to vector<128xf32>
    %41 = vector.shape_cast %40 : vector<128xf32> to vector<128x1xf32>
    %42 = vector.broadcast %41 : vector<128x1xf32> to vector<128x128xf32>
    %43 = arith.subf %39, %42 : vector<128x128xf32>
    %44 = math.exp %43 : vector<128x128xf32>
    %cst_26 = arith.constant 0.000000e+00 : f32
    %45 = vector.broadcast %cst_26 : f32 to vector<128x128xf32>
    %46 = arith.select %37, %44, %45 : vector<128x128xi1>, vector<128x128xf32>
    %cst_27 = arith.constant dense<0.000000e+00> : vector<128xf32>
    %47 = vector.multi_reduction <add>, %46, %cst_27 [1] : vector<128x128xf32> to vector<128xf32>
    %48 = vector.shape_cast %47 : vector<128xf32> to vector<128x1xf32>
    %49 = math.log %48 : vector<128x1xf32>
    %50 = vector.broadcast %49 : vector<128x1xf32> to vector<128x128xf32>
    %51 = arith.subf %43, %50 : vector<128x128xf32>
    %c0_28 = arith.constant 0 : index
    %c0_29 = arith.constant 0 : index
    %52 = vector.load %arg8[%c0_28, %c0_29] : memref<128x128xf32, #tpu.memory_space<vmem>>, vector<128x128xf32>
    tpu.vector_store %arg8[%c0_28, %c0_29], %51 {strides = array<i32>} : memref<128x128xf32, #tpu.memory_space<vmem>>, vector<128x128xf32>,
    return
  }
}

</mosaic_0001>

<llo_original>
// kernel: tpu_custom_call.1
$region0: #{tpu_custom_call.1}
  #allocation0 [shape = 'u32[]', space=smem, size = 0x4, offset = 0x4, fixed_abs, tag = 'smem constant byte address 0x4 - core index']
  #allocation1 [shape = 'u32[144,128]{1,0:T(1,128)}', space=vmem, size = 0x12000, scoped, tag = 'internal scratch']
  %s0 = inlined_call_operand.hbm [shape: bf16[128,128], index: 0, kind: input, shape index: {}]
  %s1 = inlined_call_operand.hbm [shape: bf16[128,128], index: 1, kind: input, shape index: {}]
  %s2 = inlined_call_operand.hbm [shape: bf16[128,128], index: 2, kind: input, shape index: {}]
  %s3 = inlined_call_operand.vmem [shape: f32[1,128], index: 3, kind: input, shape index: {}]
  %s4 = inlined_call_operand.hbm [shape: bf16[128,128], index: 4, kind: input, shape index: {}]
  %s5 = inlined_call_operand.vmem [shape: f32[1,128], index: 5, kind: input, shape index: {}]
  %s6 = inlined_call_operand.hbm [shape: bf16[128,128], index: 6, kind: input, shape index: {}]
  %s7 = inlined_call_operand.vmem [shape: f32[1,128], index: 7, kind: input, shape index: {}]
  %s8 = inlined_call_operand.hbm [shape: f32[128,128], index: 8, kind: output, shape index: {}]
  %s9 = sld [smem:[#allocation0]]
  $region62: #{tpu_custom_call.1} parent=0
    _
  %s11 = ssub.s32 1, %s9
  %s12 = scalar_select 0, %s11, %s9
  $region1: #{tpu_custom_call.1} parent=0
    #allocation2 [shape = 'u8[32768]{0}', space=vmem, size = 0x8000, scoped, tag = 'input window, operand 0, single buffered']
    #allocation3 [shape = 's32[1]{0}', space=sflag, size = 0x4, scoped, tag = 'scoped memory for tpu_custom_call.1']
    #allocation4 [shape = 's32[1]{0}', space=sflag, size = 0x4, scoped, tag = 'scoped memory for tpu_custom_call.1']
    #allocation5 [shape = 'u8[32768]{0}', space=vmem, size = 0x8000, scoped, tag = 'input window, operand 1, single buffered']
    #allocation6 [shape = 's32[1]{0}', space=sflag, size = 0x4, scoped, tag = 'scoped memory for tpu_custom_call.1']
    #allocation7 [shape = 'u8[32768]{0}', space=vmem, size = 0x8000, scoped, tag = 'input window, operand 2, single buffered']
    #allocation8 [shape = 'u8[32768]{0}', space=vmem, size = 0x8000, scoped, tag = 'input window, operand 4, single buffered']
    #allocation9 [shape = 's32[1]{0}', space=sflag, size = 0x4, scoped, tag = 'scoped memory for tpu_custom_call.1']
    #allocation10 [shape = 'u8[32768]{0}', space=vmem, size = 0x8000, scoped, tag = 'input window, operand 6, single buffered']
    #allocation11 [shape = 'u8[65536]{0}', space=vmem, size = 0x10000, scoped, tag = 'output window, operand 0, single buffered']
    %13 = vsyncpa [#allocation3], 0
    %14 = vsyncpa [#allocation6], 0
    %15 = vsyncpa [#allocation9], 0
    %16 = vsyncpa [#allocation4], 0
    // Predicated region
    $region2: #{tpu_custom_call.1} parent=1 // pred_check
      _
    $region3: #{tpu_custom_call.1} parent=1 // pred_check_branch
      %18 = sbr.rel (0) target = $region5
    $region4: #{tpu_custom_call.1} parent=1 // pred_region
      %s20 = ssub.s32 1024, 1024
      %21 = vsyncadd [#allocation3], %s20
      %s22 = sshll.u32 [#allocation2], 4
      %s23 = int_to_ptr.vmem [resolvable:$true] %s22
      %28 = dma.hbm_to_vmem [thread:$0]  %s0, 1024, %s23, [#allocation3], 64, 64, 4
    $region5: #{tpu_custom_call.1} parent=1 // pred_fallthru
      _
    // Predicated region
    $region6: #{tpu_custom_call.1} parent=1 // pred_check
      _
    $region7: #{tpu_custom_call.1} parent=1 // pred_check_branch
      %30 = sbr.rel (0) target = $region9
    $region8: #{tpu_custom_call.1} parent=1 // pred_region
      %s32 = ssub.s32 1024, 1024
      %33 = vsyncadd [#allocation6], %s32
      %s34 = sshll.u32 [#allocation5], 4
      %s35 = int_to_ptr.vmem [resolvable:$true] %s34
      %40 = dma.hbm_to_vmem [thread:$0]  %s1, 1024, %s35, [#allocation6], 64, 64, 4
    $region9: #{tpu_custom_call.1} parent=1 // pred_fallthru
      _
    // Predicated region
    $region10: #{tpu_custom_call.1} parent=1 // pred_check
      _
    $region11: #{tpu_custom_call.1} parent=1 // pred_check_branch
      %42 = sbr.rel (0) target = $region13
    $region12: #{tpu_custom_call.1} parent=1 // pred_region
      %s44 = ssub.s32 1024, 1024
      %45 = vsyncadd [#allocation6], %s44
      %s46 = sshll.u32 [#allocation7], 4
      %s47 = int_to_ptr.vmem [resolvable:$true] %s46
      %52 = dma.hbm_to_vmem [thread:$0]  %s2, 1024, %s47, [#allocation6], 64, 64, 4
    $region13: #{tpu_custom_call.1} parent=1 // pred_fallthru
      _
    // Predicated region
    $region14: #{tpu_custom_call.1} parent=1 // pred_check
      _
    $region15: #{tpu_custom_call.1} parent=1 // pred_check_branch
      %54 = sbr.rel (0) target = $region17
    $region16: #{tpu_custom_call.1} parent=1 // pred_region
      _
    $region17: #{tpu_custom_call.1} parent=1 // pred_fallthru
      _
    // Predicated region
    $region18: #{tpu_custom_call.1} parent=1 // pred_check
      _
    $region19: #{tpu_custom_call.1} parent=1 // pred_check_branch
      %56 = sbr.rel (0) target = $region21
    $region20: #{tpu_custom_call.1} parent=1 // pred_region
      %s58 = ssub.s32 1024, 1024
      %59 = vsyncadd [#allocation9], %s58
      %s60 = sshll.u32 [#allocation8], 4
      %s61 = int_to_ptr.vmem [resolvable:$true] %s60
      %66 = dma.hbm_to_vmem [thread:$0]  %s4, 1024, %s61, [#allocation9], 64, 64, 4
    $region21: #{tpu_custom_call.1} parent=1 // pred_fallthru
      _
    // Predicated region
    $region22: #{tpu_custom_call.1} parent=1 // pred_check
      _
    $region23: #{tpu_custom_call.1} parent=1 // pred_check_branch
      %68 = sbr.rel (0) target = $region25
    $region24: #{tpu_custom_call.1} parent=1 // pred_region
      _
    $region25: #{tpu_custom_call.1} parent=1 // pred_fallthru
      _
    // Predicated region
    $region26: #{tpu_custom_call.1} parent=1 // pred_check
      _
    $region27: #{tpu_custom_call.1} parent=1 // pred_check_branch
      %70 = sbr.rel (0) target = $region29
    $region28: #{tpu_custom_call.1} parent=1 // pred_region
      %s72 = ssub.s32 1024, 1024
      %73 = vsyncadd [#allocation9], %s72
      %s74 = sshll.u32 [#allocation10], 4
      %s75 = int_to_ptr.vmem [resolvable:$true] %s74
      %80 = dma.hbm_to_vmem [thread:$0]  %s6, 1024, %s75, [#allocation9], 64, 64, 4
    $region29: #{tpu_custom_call.1} parent=1 // pred_fallthru
      _
    // Predicated region
    $region30: #{tpu_custom_call.1} parent=1 // pred_check
      _
    $region31: #{tpu_custom_call.1} parent=1 // pred_check_branch
      %82 = sbr.rel (0) target = $region33
    $region32: #{tpu_custom_call.1} parent=1 // pred_region
      _
    $region33: #{tpu_custom_call.1} parent=1 // pred_fallthru
      _
    // Predicated region
    $region34: #{tpu_custom_call.1} parent=1 // pred_check
      _
    $region35: #{tpu_custom_call.1} parent=1 // pred_check_branch
      %84 = sbr.rel (0) target = $region37
    $region36: #{tpu_custom_call.1} parent=1 // pred_region
      %85 = dma.done [#allocation3], 1024
    $region37: #{tpu_custom_call.1} parent=1 // pred_fallthru
      _
    // Predicated region
    $region38: #{tpu_custom_call.1} parent=1 // pred_check
      _
    $region39: #{tpu_custom_call.1} parent=1 // pred_check_branch
      %87 = sbr.rel (0) target = $region41
    $region40: #{tpu_custom_call.1} parent=1 // pred_region
      %88 = dma.done [#allocation6], 1024
    $region41: #{tpu_custom_call.1} parent=1 // pred_fallthru
      _
    // Predicated region
    $region42: #{tpu_custom_call.1} parent=1 // pred_check
      _
    $region43: #{tpu_custom_call.1} parent=1 // pred_check_branch
      %90 = sbr.rel (0) target = $region45
    $region44: #{tpu_custom_call.1} parent=1 // pred_region
      %91 = dma.done [#allocation6], 1024
    $region45: #{tpu_custom_call.1} parent=1 // pred_fallthru
      _
    // Predicated region
    $region46: #{tpu_custom_call.1} parent=1 // pred_check
      _
    $region47: #{tpu_custom_call.1} parent=1 // pred_check_branch
      %93 = sbr.rel (0) target = $region49
    $region48: #{tpu_custom_call.1} parent=1 // pred_region
      %94 = dma.done [#allocation9], 1024
    $region49: #{tpu_custom_call.1} parent=1 // pred_fallthru
      _
    // Predicated region
    $region50: #{tpu_custom_call.1} parent=1 // pred_check
      _
    $region51: #{tpu_custom_call.1} parent=1 // pred_check_branch
      %96 = sbr.rel (0) target = $region53
    $region52: #{tpu_custom_call.1} parent=1 // pred_region
      %97 = dma.done [#allocation9], 1024
    $region53: #{tpu_custom_call.1} parent=1 // pred_fallthru
      _
    %v99 = vld [vmem:[#allocation5] sm:$0xf]
    %v100 = vld [vmem:[#allocation5 + $0x4] sm:$0xf]
    %v101 = vld [vmem:[#allocation5 + $0x8] sm:$0xf]
    %v102 = vld [vmem:[#allocation5 + $0xc] sm:$0xf]
    %v103 = vld [vmem:[#allocation5 + $0x10] sm:$0xf]
    %v104 = vld [vmem:[#allocation5 + $0x14] sm:$0xf]
    %v105 = vld [vmem:[#allocation5 + $0x18] sm:$0xf]
    %v106 = vld [vmem:[#allocation5 + $0x1c] sm:$0xf]
    %v107 = vld [vmem:[#allocation5 + $0x20] sm:$0xf]
    %v108 = vld [vmem:[#allocation5 + $0x24] sm:$0xf]
    %v109 = vld [vmem:[#allocation5 + $0x28] sm:$0xf]
    %v110 = vld [vmem:[#allocation5 + $0x2c] sm:$0xf]
    %v111 = vld [vmem:[#allocation5 + $0x30] sm:$0xf]
    %v112 = vld [vmem:[#allocation5 + $0x34] sm:$0xf]
    %v113 = vld [vmem:[#allocation5 + $0x38] sm:$0xf]
    %v114 = vld [vmem:[#allocation5 + $0x3c] sm:$0xf]
    %v115 = vld [vmem:[#allocation2] sm:$0xf]
    %v116 = vld [vmem:[#allocation2 + $0x4] sm:$0xf]
    %v117 = vld [vmem:[#allocation2 + $0x8] sm:$0xf]
    %v118 = vld [vmem:[#allocation2 + $0xc] sm:$0xf]
    %v119 = vld [vmem:[#allocation2 + $0x10] sm:$0xf]
    %v120 = vld [vmem:[#allocation2 + $0x14] sm:$0xf]
    %v121 = vld [vmem:[#allocation2 + $0x18] sm:$0xf]
    %v122 = vld [vmem:[#allocation2 + $0x1c] sm:$0xf]
    %v123 = vld [vmem:[#allocation2 + $0x20] sm:$0xf]
    %v124 = vld [vmem:[#allocation2 + $0x24] sm:$0xf]
    %v125 = vld [vmem:[#allocation2 + $0x28] sm:$0xf]
    %v126 = vld [vmem:[#allocation2 + $0x2c] sm:$0xf]
    %v127 = vld [vmem:[#allocation2 + $0x30] sm:$0xf]
    %v128 = vld [vmem:[#allocation2 + $0x34] sm:$0xf]
    %v129 = vld [vmem:[#allocation2 + $0x38] sm:$0xf]
    %v130 = vld [vmem:[#allocation2 + $0x3c] sm:$0xf]
    %v131 = vld [vmem:[#allocation7] sm:$0xf]
    %v132 = vld [vmem:[#allocation7 + $0x4] sm:$0xf]
    %v133 = vld [vmem:[#allocation7 + $0x8] sm:$0xf]
    %v134 = vld [vmem:[#allocation7 + $0xc] sm:$0xf]
    %v135 = vld [vmem:[#allocation7 + $0x10] sm:$0xf]
    %v136 = vld [vmem:[#allocation7 + $0x14] sm:$0xf]
    %v137 = vld [vmem:[#allocation7 + $0x18] sm:$0xf]
    %v138 = vld [vmem:[#allocation7 + $0x1c] sm:$0xf]
    %v139 = vld [vmem:[#allocation7 + $0x20] sm:$0xf]
    %v140 = vld [vmem:[#allocation7 + $0x24] sm:$0xf]
    %v141 = vld [vmem:[#allocation7 + $0x28] sm:$0xf]
    %v142 = vld [vmem:[#allocation7 + $0x2c] sm:$0xf]
    %v143 = vld [vmem:[#allocation7 + $0x30] sm:$0xf]
    %v144 = vld [vmem:[#allocation7 + $0x34] sm:$0xf]
    %v145 = vld [vmem:[#allocation7 + $0x38] sm:$0xf]
    %v146 = vld [vmem:[#allocation7 + $0x3c] sm:$0xf]
    %v163 = vunpack.c.l.b16 %v115
    %v164 = vunpack.c.l.b16 %v116
    %v165 = vunpack.c.l.b16 %v117
    %v166 = vunpack.c.l.b16 %v118
    %v167 = vunpack.c.l.b16 %v119
    %v168 = vunpack.c.l.b16 %v120
    %v169 = vunpack.c.l.b16 %v121
    %v170 = vunpack.c.l.b16 %v122
    %v171 = vunpack.c.l.b16 %v123
    %v172 = vunpack.c.l.b16 %v124
    %v173 = vunpack.c.l.b16 %v125
    %v174 = vunpack.c.l.b16 %v126
    %v175 = vunpack.c.l.b16 %v127
    %v176 = vunpack.c.l.b16 %v128
    %v177 = vunpack.c.l.b16 %v129
    %v178 = vunpack.c.l.b16 %v130
    %v179 = vpack.c.b16 %v164, %v163
    %v180 = vpack.c.b16 %v166, %v165
    %v181 = vpack.c.b16 %v168, %v167
    %v182 = vpack.c.b16 %v170, %v169
    %v183 = vpack.c.b16 %v172, %v171
    %v184 = vpack.c.b16 %v174, %v173
    %v185 = vpack.c.b16 %v176, %v175
    %v186 = vpack.c.b16 %v178, %v177
    %v211 = vunpack.c.l.b16 %v131
    %v212 = vunpack.c.l.b16 %v132
    %v213 = vunpack.c.l.b16 %v133
    %v214 = vunpack.c.l.b16 %v134
    %v215 = vunpack.c.l.b16 %v135
    %v216 = vunpack.c.l.b16 %v136
    %v217 = vunpack.c.l.b16 %v137
    %v218 = vunpack.c.l.b16 %v138
    %v219 = vunpack.c.l.b16 %v139
    %v220 = vunpack.c.l.b16 %v140
    %v221 = vunpack.c.l.b16 %v141
    %v222 = vunpack.c.l.b16 %v142
    %v223 = vunpack.c.l.b16 %v143
    %v224 = vunpack.c.l.b16 %v144
    %v225 = vunpack.c.l.b16 %v145
    %v226 = vunpack.c.l.b16 %v146
    %v227 = vpack.c.b16 %v212, %v211
    %v228 = vpack.c.b16 %v214, %v213
    %v229 = vpack.c.b16 %v216, %v215
    %v230 = vpack.c.b16 %v218, %v217
    %v231 = vpack.c.b16 %v220, %v219
    %v232 = vpack.c.b16 %v222, %v221
    %v233 = vpack.c.b16 %v224, %v223
    %v234 = vpack.c.b16 %v226, %v225
    %243 = vmatprep.subr.bf16.mxu0 0
    %244 = vmatpush1.bf16.msra.mxu0 %v227
    %245 = vmatprep.subr.bf16.mxu0 0
    %246 = vmatpush1.bf16.msra.mxu0 %v228
    %247 = vmatprep.subr.bf16.mxu0 0
    %248 = vmatpush1.bf16.msra.mxu0 %v229
    %249 = vmatprep.subr.bf16.mxu0 0
    %250 = vmatpush1.bf16.msra.mxu0 %v230
    %251 = vmatprep.subr.bf16.mxu0 0
    %252 = vmatpush1.bf16.msra.mxu0 %v231
    %253 = vmatprep.subr.bf16.mxu0 0
    %254 = vmatpush1.bf16.msra.mxu0 %v232
    %255 = vmatprep.subr.bf16.mxu0 0
    %256 = vmatpush1.bf16.msra.mxu0 %v233
    %257 = vmatprep.subr.bf16.mxu0 0
    %258 = vmatpush1.bf16.msra.mxu0 %v234
    %259 = vmatprep.subr.bf16.mxu0 0
    %260 = vmatpush1.bf16.msra.mxu0 0
    %261 = vmatprep.subr.bf16.mxu0 0
    %262 = vmatpush1.bf16.msra.mxu0 0
    %263 = vmatprep.subr.bf16.mxu0 0
    %264 = vmatpush1.bf16.msra.mxu0 0
    %265 = vmatprep.subr.bf16.mxu0 0
    %266 = vmatpush1.bf16.msra.mxu0 0
    %267 = vmatprep.subr.bf16.mxu0 0
    %268 = vmatpush1.bf16.msra.mxu0 0
    %269 = vmatprep.subr.bf16.mxu0 0
    %270 = vmatpush1.bf16.msra.mxu0 0
    %271 = vmatprep.subr.bf16.mxu0 0
    %272 = vmatpush1.bf16.msra.mxu0 0
    %273 = vmatprep.subr.bf16.mxu0 0
    %274 = vmatpush1.bf16.msra.mxu0 0
    %275 = vmatprep.mubr.bf16.mxu0 0
    %276 = vmatmul.mubr.bf16.gmra.mrb[0].mxu0 %v179
    %v277 = vpop.f32.mrb[0].mxu0
    %v278 = vadd.f32 0.0, %v277
    %v279 = vpop.f32.mrb[0].mxu0
    %v280 = vpop.f32.mrb[0].mxu0
    %v281 = vadd.f32 0.0, %v280
    %v282 = vpop.f32.mrb[0].mxu0
    %283 = vmatprep.mubr.bf16.mxu0 0
    %284 = vmatmul.mubr.bf16.gmra.mrb[0].mxu0 %v180
    %v285 = vpop.f32.mrb[0].mxu0
    %v286 = vadd.f32 0.0, %v285
    %v287 = vpop.f32.mrb[0].mxu0
    %v288 = vpop.f32.mrb[0].mxu0
    %v289 = vadd.f32 0.0, %v288
    %v290 = vpop.f32.mrb[0].mxu0
    %291 = vmatprep.mubr.bf16.mxu0 0
    %292 = vmatmul.mubr.bf16.gmra.mrb[0].mxu0 %v181
    %v293 = vpop.f32.mrb[0].mxu0
    %v294 = vadd.f32 0.0, %v293
    %v295 = vpop.f32.mrb[0].mxu0
    %v296 = vpop.f32.mrb[0].mxu0
    %v297 = vadd.f32 0.0, %v296
    %v298 = vpop.f32.mrb[0].mxu0
    %299 = vmatprep.mubr.bf16.mxu0 0
    %300 = vmatmul.mubr.bf16.gmra.mrb[0].mxu0 %v182
    %v301 = vpop.f32.mrb[0].mxu0
    %v302 = vadd.f32 0.0, %v301
    %v303 = vpop.f32.mrb[0].mxu0
    %v304 = vpop.f32.mrb[0].mxu0
    %v305 = vadd.f32 0.0, %v304
    %v306 = vpop.f32.mrb[0].mxu0
    %307 = vmatprep.mubr.bf16.mxu0 0
    %308 = vmatmul.mubr.bf16.gmra.mrb[0].mxu0 %v183
    %v309 = vpop.f32.mrb[0].mxu0
    %v310 = vadd.f32 0.0, %v309
    %v311 = vpop.f32.mrb[0].mxu0
    %v312 = vpop.f32.mrb[0].mxu0
    %v313 = vadd.f32 0.0, %v312
    %v314 = vpop.f32.mrb[0].mxu0
    %315 = vmatprep.mubr.bf16.mxu0 0
    %316 = vmatmul.mubr.bf16.gmra.mrb[0].mxu0 %v184
    %v317 = vpop.f32.mrb[0].mxu0
    %v318 = vadd.f32 0.0, %v317
    %v319 = vpop.f32.mrb[0].mxu0
    %v320 = vpop.f32.mrb[0].mxu0
    %v321 = vadd.f32 0.0, %v320
    %v322 = vpop.f32.mrb[0].mxu0
    %323 = vmatprep.mubr.bf16.mxu0 0
    %324 = vmatmul.mubr.bf16.gmra.mrb[0].mxu0 %v185
    %v325 = vpop.f32.mrb[0].mxu0
    %v326 = vadd.f32 0.0, %v325
    %v327 = vpop.f32.mrb[0].mxu0
    %v328 = vpop.f32.mrb[0].mxu0
    %v329 = vadd.f32 0.0, %v328
    %v330 = vpop.f32.mrb[0].mxu0
    %331 = vmatprep.mubr.bf16.mxu0 0
    %332 = vmatmul.mubr.bf16.gmra.mrb[0].mxu0 %v186
    %v333 = vpop.f32.mrb[0].mxu0
    %v334 = vadd.f32 0.0, %v333
    %v335 = vpop.f32.mrb[0].mxu0
    %v336 = vpop.f32.mrb[0].mxu0
    %v337 = vadd.f32 0.0, %v336
    %v338 = vpop.f32.mrb[0].mxu0
    %339 = vdwg.mxu0
    %v340 = vpack.c.bf16 %v281, %v278
    %v341 = vpack.c.bf16 %v289, %v286
    %v342 = vpack.c.bf16 %v297, %v294
    %v343 = vpack.c.bf16 %v305, %v302
    %v344 = vpack.c.bf16 %v313, %v310
    %v345 = vpack.c.bf16 %v321, %v318
    %v346 = vpack.c.bf16 %v329, %v326
    %v347 = vpack.c.bf16 %v337, %v334
    %v348 = vld [vmem:[%s3] sm:$0x1]
    %v350 = vlaneseq
    %v351 = vshrl.u32 %v350, 7
    %v352 = vsub.s32 0, %v351
    %v353 = vrot.slane %v348, %v352
    %v371 = vunpack.c.l.b16 %v99
    %v372 = vunpack.c.l.b16 %v100
    %v373 = vunpack.c.l.b16 %v101
    %v374 = vunpack.c.l.b16 %v102
    %v375 = vunpack.c.l.b16 %v103
    %v376 = vunpack.c.l.b16 %v104
    %v377 = vunpack.c.l.b16 %v105
    %v378 = vunpack.c.l.b16 %v106
    %v379 = vunpack.c.l.b16 %v107
    %v380 = vunpack.c.l.b16 %v108
    %v381 = vunpack.c.l.b16 %v109
    %v382 = vunpack.c.l.b16 %v110
    %v383 = vunpack.c.l.b16 %v111
    %v384 = vunpack.c.l.b16 %v112
    %v385 = vunpack.c.l.b16 %v113
    %v386 = vunpack.c.l.b16 %v114
    %v387 = vpack.c.b16 %v372, %v371
    %v388 = vpack.c.b16 %v374, %v373
    %v389 = vpack.c.b16 %v376, %v375
    %v390 = vpack.c.b16 %v378, %v377
    %v391 = vpack.c.b16 %v380, %v379
    %v392 = vpack.c.b16 %v382, %v381
    %v393 = vpack.c.b16 %v384, %v383
    %v394 = vpack.c.b16 %v386, %v385
    %403 = vmatprep.subr.bf16.mxu0 0
    %404 = vmatpush1.bf16.msra.mxu0 %v340
    %405 = vmatprep.subr.bf16.mxu0 0
    %406 = vmatpush1.bf16.msra.mxu0 %v341
    %407 = vmatprep.subr.bf16.mxu0 0
    %408 = vmatpush1.bf16.msra.mxu0 %v342
    %409 = vmatprep.subr.bf16.mxu0 0
    %410 = vmatpush1.bf16.msra.mxu0 %v343
    %411 = vmatprep.subr.bf16.mxu0 0
    %412 = vmatpush1.bf16.msra.mxu0 %v344
    %413 = vmatprep.subr.bf16.mxu0 0
    %414 = vmatpush1.bf16.msra.mxu0 %v345
    %415 = vmatprep.subr.bf16.mxu0 0
    %416 = vmatpush1.bf16.msra.mxu0 %v346
    %417 = vmatprep.subr.bf16.mxu0 0
    %418 = vmatpush1.bf16.msra.mxu0 %v347
    %419 = vmatprep.subr.bf16.mxu0 0
    %420 = vmatpush1.bf16.msra.mxu0 0
    %421 = vmatprep.subr.bf16.mxu0 0
    %422 = vmatpush1.bf16.msra.mxu0 0
    %423 = vmatprep.subr.bf16.mxu0 0
    %424 = vmatpush1.bf16.msra.mxu0 0
    %425 = vmatprep.subr.bf16.mxu0 0
    %426 = vmatpush1.bf16.msra.mxu0 0
    %427 = vmatprep.subr.bf16.mxu0 0
    %428 = vmatpush1.bf16.msra.mxu0 0
    %429 = vmatprep.subr.bf16.mxu0 0
    %430 = vmatpush1.bf16.msra.mxu0 0
    %431 = vmatprep.subr.bf16.mxu0 0
    %432 = vmatpush1.bf16.msra.mxu0 0
    %433 = vmatprep.subr.bf16.mxu0 0
    %434 = vmatpush1.bf16.msra.mxu0 0
    %435 = vmatprep.mubr.bf16.mxu0 0
    %436 = vmatmul.mubr.bf16.gmra.mrb[0].mxu0 %v387
    %v437 = vpop.f32.mrb[0].mxu0
    %v438 = vadd.f32 %v353, %v437
    %v439 = vpop.f32.mrb[0].mxu0
    %v440 = vpop.f32.mrb[0].mxu0
    %v441 = vadd.f32 %v353, %v440
    %v442 = vpop.f32.mrb[0].mxu0
    %443 = vmatprep.mubr.bf16.mxu0 0
    %444 = vmatmul.mubr.bf16.gmra.mrb[0].mxu0 %v388
    %v445 = vpop.f32.mrb[0].mxu0
    %v446 = vadd.f32 %v353, %v445
    %v447 = vpop.f32.mrb[0].mxu0
    %v448 = vpop.f32.mrb[0].mxu0
    %v449 = vadd.f32 %v353, %v448
    %v450 = vpop.f32.mrb[0].mxu0
    %451 = vmatprep.mubr.bf16.mxu0 0
    %452 = vmatmul.mubr.bf16.gmra.mrb[0].mxu0 %v389
    %v453 = vpop.f32.mrb[0].mxu0
    %v454 = vadd.f32 %v353, %v453
    %v455 = vpop.f32.mrb[0].mxu0
    %v456 = vpop.f32.mrb[0].mxu0
    %v457 = vadd.f32 %v353, %v456
    %v458 = vpop.f32.mrb[0].mxu0
    %459 = vmatprep.mubr.bf16.mxu0 0
    %460 = vmatmul.mubr.bf16.gmra.mrb[0].mxu0 %v390
    %v461 = vpop.f32.mrb[0].mxu0
    %v462 = vadd.f32 %v353, %v461
    %v463 = vpop.f32.mrb[0].mxu0
    %v464 = vpop.f32.mrb[0].mxu0
    %v465 = vadd.f32 %v353, %v464
    %v466 = vpop.f32.mrb[0].mxu0
    %467 = vmatprep.mubr.bf16.mxu0 0
    %468 = vmatmul.mubr.bf16.gmra.mrb[0].mxu0 %v391
    %v469 = vpop.f32.mrb[0].mxu0
    %v470 = vadd.f32 %v353, %v469
    %v471 = vpop.f32.mrb[0].mxu0
    %v472 = vpop.f32.mrb[0].mxu0
    %v473 = vadd.f32 %v353, %v472
    %v474 = vpop.f32.mrb[0].mxu0
    %475 = vmatprep.mubr.bf16.mxu0 0
    %476 = vmatmul.mubr.bf16.gmra.mrb[0].mxu0 %v392
    %v477 = vpop.f32.mrb[0].mxu0
    %v478 = vadd.f32 %v353, %v477
    %v479 = vpop.f32.mrb[0].mxu0
    %v480 = vpop.f32.mrb[0].mxu0
    %v481 = vadd.f32 %v353, %v480
    %v482 = vpop.f32.mrb[0].mxu0
    %483 = vmatprep.mubr.bf16.mxu0 0
    %484 = vmatmul.mubr.bf16.gmra.mrb[0].mxu0 %v393
    %v485 = vpop.f32.mrb[0].mxu0
    %v486 = vadd.f32 %v353, %v485
    %v487 = vpop.f32.mrb[0].mxu0
    %v488 = vpop.f32.mrb[0].mxu0
    %v489 = vadd.f32 %v353, %v488
    %v490 = vpop.f32.mrb[0].mxu0
    %491 = vmatprep.mubr.bf16.mxu0 0
    %492 = vmatmul.mubr.bf16.gmra.mrb[0].mxu0 %v394
    %v493 = vpop.f32.mrb[0].mxu0
    %v494 = vadd.f32 %v353, %v493
    %v495 = vpop.f32.mrb[0].mxu0
    %v496 = vpop.f32.mrb[0].mxu0
    %v497 = vadd.f32 %v353, %v496
    %v498 = vpop.f32.mrb[0].mxu0
    %499 = vdwg.mxu0
    %vm500 = vcmp.ge.f32.partialorder %v438, 0.0
    %vm501 = vcmp.ge.f32.partialorder %v441, 0.0
    %vm502 = vcmp.ge.f32.partialorder %v446, 0.0
    %vm503 = vcmp.ge.f32.partialorder %v449, 0.0
    %vm504 = vcmp.ge.f32.partialorder %v454, 0.0
    %vm505 = vcmp.ge.f32.partialorder %v457, 0.0
    %vm506 = vcmp.ge.f32.partialorder %v462, 0.0
    %vm507 = vcmp.ge.f32.partialorder %v465, 0.0
    %vm508 = vcmp.ge.f32.partialorder %v470, 0.0
    %vm509 = vcmp.ge.f32.partialorder %v473, 0.0
    %vm510 = vcmp.ge.f32.partialorder %v478, 0.0
    %vm511 = vcmp.ge.f32.partialorder %v481, 0.0
    %vm512 = vcmp.ge.f32.partialorder %v486, 0.0
    %vm513 = vcmp.ge.f32.partialorder %v489, 0.0
    %vm514 = vcmp.ge.f32.partialorder %v494, 0.0
    %vm515 = vcmp.ge.f32.partialorder %v497, 0.0
    %v516 = vmul.f32 %v438, 0.01
    %v517 = vmul.f32 %v441, 0.01
    %v518 = vmul.f32 %v446, 0.01
    %v519 = vmul.f32 %v449, 0.01
    %v520 = vmul.f32 %v454, 0.01
    %v521 = vmul.f32 %v457, 0.01
    %v522 = vmul.f32 %v462, 0.01
    %v523 = vmul.f32 %v465, 0.01
    %v524 = vmul.f32 %v470, 0.01
    %v525 = vmul.f32 %v473, 0.01
    %v526 = vmul.f32 %v478, 0.01
    %v527 = vmul.f32 %v481, 0.01
    %v528 = vmul.f32 %v486, 0.01
    %v529 = vmul.f32 %v489, 0.01
    %v530 = vmul.f32 %v494, 0.01
    %v531 = vmul.f32 %v497, 0.01
    %v532 = vsel %vm500, %v438, %v516
    %v533 = vsel %vm501, %v441, %v517
    %v534 = vsel %vm502, %v446, %v518
    %v535 = vsel %vm503, %v449, %v519
    %v536 = vsel %vm504, %v454, %v520
    %v537 = vsel %vm505, %v457, %v521
    %v538 = vsel %vm506, %v462, %v522
    %v539 = vsel %vm507, %v465, %v523
    %v540 = vsel %vm508, %v470, %v524
    %v541 = vsel %vm509, %v473, %v525
    %v542 = vsel %vm510, %v478, %v526
    %v543 = vsel %vm511, %v481, %v527
    %v544 = vsel %vm512, %v486, %v528
    %v545 = vsel %vm513, %v489, %v529
    %v546 = vsel %vm514, %v494, %v530
    %v547 = vsel %vm515, %v497, %v531
    %v548 = vpack.c.bf16 %v533, %v532
    %v549 = vpack.c.bf16 %v535, %v534
    %v550 = vpack.c.bf16 %v537, %v536
    %v551 = vpack.c.bf16 %v539, %v538
    %v552 = vpack.c.bf16 %v541, %v540
    %v553 = vpack.c.bf16 %v543, %v542
    %v554 = vpack.c.bf16 %v545, %v544
    %v555 = vpack.c.bf16 %v547, %v546
    %v556 = vld [vmem:[#allocation8] sm:$0xf]
    %v557 = vld [vmem:[#allocation8 + $0x4] sm:$0xf]
    %v558 = vld [vmem:[#allocation8 + $0x8] sm:$0xf]
    %v559 = vld [vmem:[#allocation8 + $0xc] sm:$0xf]
    %v560 = vld [vmem:[#allocation8 + $0x10] sm:$0xf]
    %v561 = vld [vmem:[#allocation8 + $0x14] sm:$0xf]
    %v562 = vld [vmem:[#allocation8 + $0x18] sm:$0xf]
    %v563 = vld [vmem:[#allocation8 + $0x1c] sm:$0xf]
    %v564 = vld [vmem:[#allocation8 + $0x20] sm:$0xf]
    %v565 = vld [vmem:[#allocation8 + $0x24] sm:$0xf]
    %v566 = vld [vmem:[#allocation8 + $0x28] sm:$0xf]
    %v567 = vld [vmem:[#allocation8 + $0x2c] sm:$0xf]
    %v568 = vld [vmem:[#allocation8 + $0x30] sm:$0xf]
    %v569 = vld [vmem:[#allocation8 + $0x34] sm:$0xf]
    %v570 = vld [vmem:[#allocation8 + $0x38] sm:$0xf]
    %v571 = vld [vmem:[#allocation8 + $0x3c] sm:$0xf]
    %v588 = vunpack.c.l.b16 %v556
    %v589 = vunpack.c.l.b16 %v557
    %v590 = vunpack.c.l.b16 %v558
    %v591 = vunpack.c.l.b16 %v559
    %v592 = vunpack.c.l.b16 %v560
    %v593 = vunpack.c.l.b16 %v561
    %v594 = vunpack.c.l.b16 %v562
    %v595 = vunpack.c.l.b16 %v563
    %v596 = vunpack.c.l.b16 %v564
    %v597 = vunpack.c.l.b16 %v565
    %v598 = vunpack.c.l.b16 %v566
    %v599 = vunpack.c.l.b16 %v567
    %v600 = vunpack.c.l.b16 %v568
    %v601 = vunpack.c.l.b16 %v569
    %v602 = vunpack.c.l.b16 %v570
    %v603 = vunpack.c.l.b16 %v571
    %v604 = vpack.c.b16 %v589, %v588
    %v605 = vpack.c.b16 %v591, %v590
    %v606 = vpack.c.b16 %v593, %v592
    %v607 = vpack.c.b16 %v595, %v594
    %v608 = vpack.c.b16 %v597, %v596
    %v609 = vpack.c.b16 %v599, %v598
    %v610 = vpack.c.b16 %v601, %v600
    %v611 = vpack.c.b16 %v603, %v602
    %620 = vmatprep.subr.bf16.mxu0 0
    %621 = vmatpush1.bf16.msra.mxu0 %v604
    %622 = vmatprep.subr.bf16.mxu0 0
    %623 = vmatpush1.bf16.msra.mxu0 %v605
    %624 = vmatprep.subr.bf16.mxu0 0
    %625 = vmatpush1.bf16.msra.mxu0 %v606
    %626 = vmatprep.subr.bf16.mxu0 0
    %627 = vmatpush1.bf16.msra.mxu0 %v607
    %628 = vmatprep.subr.bf16.mxu0 0
    %629 = vmatpush1.bf16.msra.mxu0 %v608
    %630 = vmatprep.subr.bf16.mxu0 0
    %631 = vmatpush1.bf16.msra.mxu0 %v609
    %632 = vmatprep.subr.bf16.mxu0 0
    %633 = vmatpush1.bf16.msra.mxu0 %v610
    %634 = vmatprep.subr.bf16.mxu0 0
    %635 = vmatpush1.bf16.msra.mxu0 %v611
    %636 = vmatprep.subr.bf16.mxu0 0
    %637 = vmatpush1.bf16.msra.mxu0 0
    %638 = vmatprep.subr.bf16.mxu0 0
    %639 = vmatpush1.bf16.msra.mxu0 0
    %640 = vmatprep.subr.bf16.mxu0 0
    %641 = vmatpush1.bf16.msra.mxu0 0
    %642 = vmatprep.subr.bf16.mxu0 0
    %643 = vmatpush1.bf16.msra.mxu0 0
    %644 = vmatprep.subr.bf16.mxu0 0
    %645 = vmatpush1.bf16.msra.mxu0 0
    %646 = vmatprep.subr.bf16.mxu0 0
    %647 = vmatpush1.bf16.msra.mxu0 0
    %648 = vmatprep.subr.bf16.mxu0 0
    %649 = vmatpush1.bf16.msra.mxu0 0
    %650 = vmatprep.subr.bf16.mxu0 0
    %651 = vmatpush1.bf16.msra.mxu0 0
    %652 = vmatprep.mubr.bf16.mxu0 0
    %653 = vmatmul.mubr.bf16.gmra.mrb[0].mxu0 %v548
    %v654 = vpop.f32.mrb[0].mxu0
    %v655 = vadd.f32 0.0, %v654
    %v656 = vpop.f32.mrb[0].mxu0
    %v657 = vpop.f32.mrb[0].mxu0
    %v658 = vadd.f32 0.0, %v657
    %v659 = vpop.f32.mrb[0].mxu0
    %660 = vmatprep.mubr.bf16.mxu0 0
    %661 = vmatmul.mubr.bf16.gmra.mrb[0].mxu0 %v549
    %v662 = vpop.f32.mrb[0].mxu0
    %v663 = vadd.f32 0.0, %v662
    %v664 = vpop.f32.mrb[0].mxu0
    %v665 = vpop.f32.mrb[0].mxu0
    %v666 = vadd.f32 0.0, %v665
    %v667 = vpop.f32.mrb[0].mxu0
    %668 = vmatprep.mubr.bf16.mxu0 0
    %669 = vmatmul.mubr.bf16.gmra.mrb[0].mxu0 %v550
    %v670 = vpop.f32.mrb[0].mxu0
    %v671 = vadd.f32 0.0, %v670
    %v672 = vpop.f32.mrb[0].mxu0
    %v673 = vpop.f32.mrb[0].mxu0
    %v674 = vadd.f32 0.0, %v673
    %v675 = vpop.f32.mrb[0].mxu0
    %676 = vmatprep.mubr.bf16.mxu0 0
    %677 = vmatmul.mubr.bf16.gmra.mrb[0].mxu0 %v551
    %v678 = vpop.f32.mrb[0].mxu0
    %v679 = vadd.f32 0.0, %v678
    %v680 = vpop.f32.mrb[0].mxu0
    %v681 = vpop.f32.mrb[0].mxu0
    %v682 = vadd.f32 0.0, %v681
    %v683 = vpop.f32.mrb[0].mxu0
    %684 = vmatprep.mubr.bf16.mxu0 0
    %685 = vmatmul.mubr.bf16.gmra.mrb[0].mxu0 %v552
    %v686 = vpop.f32.mrb[0].mxu0
    %v687 = vadd.f32 0.0, %v686
    %v688 = vpop.f32.mrb[0].mxu0
    %v689 = vpop.f32.mrb[0].mxu0
    %v690 = vadd.f32 0.0, %v689
    %v691 = vpop.f32.mrb[0].mxu0
    %692 = vmatprep.mubr.bf16.mxu0 0
    %693 = vmatmul.mubr.bf16.gmra.mrb[0].mxu0 %v553
    %v694 = vpop.f32.mrb[0].mxu0
    %v695 = vadd.f32 0.0, %v694
    %v696 = vpop.f32.mrb[0].mxu0
    %v697 = vpop.f32.mrb[0].mxu0
    %v698 = vadd.f32 0.0, %v697
    %v699 = vpop.f32.mrb[0].mxu0
    %700 = vmatprep.mubr.bf16.mxu0 0
    %701 = vmatmul.mubr.bf16.gmra.mrb[0].mxu0 %v554
    %v702 = vpop.f32.mrb[0].mxu0
    %v703 = vadd.f32 0.0, %v702
    %v704 = vpop.f32.mrb[0].mxu0
    %v705 = vpop.f32.mrb[0].mxu0
    %v706 = vadd.f32 0.0, %v705
    %v707 = vpop.f32.mrb[0].mxu0
    %708 = vmatprep.mubr.bf16.mxu0 0
    %709 = vmatmul.mubr.bf16.gmra.mrb[0].mxu0 %v555
    %v710 = vpop.f32.mrb[0].mxu0
    %v711 = vadd.f32 0.0, %v710
    %v712 = vpop.f32.mrb[0].mxu0
    %v713 = vpop.f32.mrb[0].mxu0
    %v714 = vadd.f32 0.0, %v713
    %v715 = vpop.f32.mrb[0].mxu0
    %716 = vdwg.mxu0
    %v717 = vpack.c.bf16 %v658, %v655
    %v718 = vpack.c.bf16 %v666, %v663
    %v719 = vpack.c.bf16 %v674, %v671
    %v720 = vpack.c.bf16 %v682, %v679
    %v721 = vpack.c.bf16 %v690, %v687
    %v722 = vpack.c.bf16 %v698, %v695
    %v723 = vpack.c.bf16 %v706, %v703
    %v724 = vpack.c.bf16 %v714, %v711
    %v725 = vld [vmem:[%s5] sm:$0x1]
    %v727 = vlaneseq
    %v728 = vshrl.u32 %v727, 7
    %v729 = vsub.s32 0, %v728
    %v730 = vrot.slane %v725, %v729
    %732 = vmatprep.subr.bf16.mxu0 0
    %733 = vmatpush1.bf16.msra.mxu0 %v717
    %734 = vmatprep.subr.bf16.mxu0 0
    %735 = vmatpush1.bf16.msra.mxu0 %v718
    %736 = vmatprep.subr.bf16.mxu0 0
    %737 = vmatpush1.bf16.msra.mxu0 %v719
    %738 = vmatprep.subr.bf16.mxu0 0
    %739 = vmatpush1.bf16.msra.mxu0 %v720
    %740 = vmatprep.subr.bf16.mxu0 0
    %741 = vmatpush1.bf16.msra.mxu0 %v721
    %742 = vmatprep.subr.bf16.mxu0 0
    %743 = vmatpush1.bf16.msra.mxu0 %v722
    %744 = vmatprep.subr.bf16.mxu0 0
    %745 = vmatpush1.bf16.msra.mxu0 %v723
    %746 = vmatprep.subr.bf16.mxu0 0
    %747 = vmatpush1.bf16.msra.mxu0 %v724
    %748 = vmatprep.subr.bf16.mxu0 0
    %749 = vmatpush1.bf16.msra.mxu0 0
    %750 = vmatprep.subr.bf16.mxu0 0
    %751 = vmatpush1.bf16.msra.mxu0 0
    %752 = vmatprep.subr.bf16.mxu0 0
    %753 = vmatpush1.bf16.msra.mxu0 0
    %754 = vmatprep.subr.bf16.mxu0 0
    %755 = vmatpush1.bf16.msra.mxu0 0
    %756 = vmatprep.subr.bf16.mxu0 0
    %757 = vmatpush1.bf16.msra.mxu0 0
    %758 = vmatprep.subr.bf16.mxu0 0
    %759 = vmatpush1.bf16.msra.mxu0 0
    %760 = vmatprep.subr.bf16.mxu0 0
    %761 = vmatpush1.bf16.msra.mxu0 0
    %762 = vmatprep.subr.bf16.mxu0 0
    %763 = vmatpush1.bf16.msra.mxu0 0
    %764 = vmatprep.mubr.bf16.mxu0 0
    %765 = vmatmul.mubr.bf16.gmra.mrb[0].mxu0 %v387
    %v766 = vpop.f32.mrb[0].mxu0
    %v767 = vadd.f32 %v730, %v766
    %v768 = vpop.f32.mrb[0].mxu0
    %v769 = vpop.f32.mrb[0].mxu0
    %v770 = vadd.f32 %v730, %v769
    %v771 = vpop.f32.mrb[0].mxu0
    %772 = vmatprep.mubr.bf16.mxu0 0
    %773 = vmatmul.mubr.bf16.gmra.mrb[0].mxu0 %v388
    %v774 = vpop.f32.mrb[0].mxu0
    %v775 = vadd.f32 %v730, %v774
    %v776 = vpop.f32.mrb[0].mxu0
    %v777 = vpop.f32.mrb[0].mxu0
    %v778 = vadd.f32 %v730, %v777
    %v779 = vpop.f32.mrb[0].mxu0
    %780 = vmatprep.mubr.bf16.mxu0 0
    %781 = vmatmul.mubr.bf16.gmra.mrb[0].mxu0 %v389
    %v782 = vpop.f32.mrb[0].mxu0
    %v783 = vadd.f32 %v730, %v782
    %v784 = vpop.f32.mrb[0].mxu0
    %v785 = vpop.f32.mrb[0].mxu0
    %v786 = vadd.f32 %v730, %v785
    %v787 = vpop.f32.mrb[0].mxu0
    %788 = vmatprep.mubr.bf16.mxu0 0
    %789 = vmatmul.mubr.bf16.gmra.mrb[0].mxu0 %v390
    %v790 = vpop.f32.mrb[0].mxu0
    %v791 = vadd.f32 %v730, %v790
    %v792 = vpop.f32.mrb[0].mxu0
    %v793 = vpop.f32.mrb[0].mxu0
    %v794 = vadd.f32 %v730, %v793
    %v795 = vpop.f32.mrb[0].mxu0
    %796 = vmatprep.mubr.bf16.mxu0 0
    %797 = vmatmul.mubr.bf16.gmra.mrb[0].mxu0 %v391
    %v798 = vpop.f32.mrb[0].mxu0
    %v799 = vadd.f32 %v730, %v798
    %v800 = vpop.f32.mrb[0].mxu0
    %v801 = vpop.f32.mrb[0].mxu0
    %v802 = vadd.f32 %v730, %v801
    %v803 = vpop.f32.mrb[0].mxu0
    %804 = vmatprep.mubr.bf16.mxu0 0
    %805 = vmatmul.mubr.bf16.gmra.mrb[0].mxu0 %v392
    %v806 = vpop.f32.mrb[0].mxu0
    %v807 = vadd.f32 %v730, %v806
    %v808 = vpop.f32.mrb[0].mxu0
    %v809 = vpop.f32.mrb[0].mxu0
    %v810 = vadd.f32 %v730, %v809
    %v811 = vpop.f32.mrb[0].mxu0
    %812 = vmatprep.mubr.bf16.mxu0 0
    %813 = vmatmul.mubr.bf16.gmra.mrb[0].mxu0 %v393
    %v814 = vpop.f32.mrb[0].mxu0
    %v815 = vadd.f32 %v730, %v814
    %v816 = vpop.f32.mrb[0].mxu0
    %v817 = vpop.f32.mrb[0].mxu0
    %v818 = vadd.f32 %v730, %v817
    %v819 = vpop.f32.mrb[0].mxu0
    %820 = vmatprep.mubr.bf16.mxu0 0
    %821 = vmatmul.mubr.bf16.gmra.mrb[0].mxu0 %v394
    %v822 = vpop.f32.mrb[0].mxu0
    %v823 = vadd.f32 %v730, %v822
    %v824 = vpop.f32.mrb[0].mxu0
    %v825 = vpop.f32.mrb[0].mxu0
    %v826 = vadd.f32 %v730, %v825
    %v827 = vpop.f32.mrb[0].mxu0
    %828 = vdwg.mxu0
    %vm829 = vcmp.ge.f32.partialorder %v767, 0.0
    %vm830 = vcmp.ge.f32.partialorder %v770, 0.0
    %vm831 = vcmp.ge.f32.partialorder %v775, 0.0
    %vm832 = vcmp.ge.f32.partialorder %v778, 0.0
    %vm833 = vcmp.ge.f32.partialorder %v783, 0.0
    %vm834 = vcmp.ge.f32.partialorder %v786, 0.0
    %vm835 = vcmp.ge.f32.partialorder %v791, 0.0
    %vm836 = vcmp.ge.f32.partialorder %v794, 0.0
    %vm837 = vcmp.ge.f32.partialorder %v799, 0.0
    %vm838 = vcmp.ge.f32.partialorder %v802, 0.0
    %vm839 = vcmp.ge.f32.partialorder %v807, 0.0
    %vm840 = vcmp.ge.f32.partialorder %v810, 0.0
    %vm841 = vcmp.ge.f32.partialorder %v815, 0.0
    %vm842 = vcmp.ge.f32.partialorder %v818, 0.0
    %vm843 = vcmp.ge.f32.partialorder %v823, 0.0
    %vm844 = vcmp.ge.f32.partialorder %v826, 0.0
    %v845 = vmul.f32 %v767, 0.01
    %v846 = vmul.f32 %v770, 0.01
    %v847 = vmul.f32 %v775, 0.01
    %v848 = vmul.f32 %v778, 0.01
    %v849 = vmul.f32 %v783, 0.01
    %v850 = vmul.f32 %v786, 0.01
    %v851 = vmul.f32 %v791, 0.01
    %v852 = vmul.f32 %v794, 0.01
    %v853 = vmul.f32 %v799, 0.01
    %v854 = vmul.f32 %v802, 0.01
    %v855 = vmul.f32 %v807, 0.01
    %v856 = vmul.f32 %v810, 0.01
    %v857 = vmul.f32 %v815, 0.01
    %v858 = vmul.f32 %v818, 0.01
    %v859 = vmul.f32 %v823, 0.01
    %v860 = vmul.f32 %v826, 0.01
    %v861 = vsel %vm829, %v767, %v845
    %v862 = vsel %vm830, %v770, %v846
    %v863 = vsel %vm831, %v775, %v847
    %v864 = vsel %vm832, %v778, %v848
    %v865 = vsel %vm833, %v783, %v849
    %v866 = vsel %vm834, %v786, %v850
    %v867 = vsel %vm835, %v791, %v851
    %v868 = vsel %vm836, %v794, %v852
    %v869 = vsel %vm837, %v799, %v853
    %v870 = vsel %vm838, %v802, %v854
    %v871 = vsel %vm839, %v807, %v855
    %v872 = vsel %vm840, %v810, %v856
    %v873 = vsel %vm841, %v815, %v857
    %v874 = vsel %vm842, %v818, %v858
    %v875 = vsel %vm843, %v823, %v859
    %v876 = vsel %vm844, %v826, %v860
    %v877 = vpack.c.bf16 %v862, %v861
    %v878 = vpack.c.bf16 %v864, %v863
    %v879 = vpack.c.bf16 %v866, %v865
    %v880 = vpack.c.bf16 %v868, %v867
    %v881 = vpack.c.bf16 %v870, %v869
    %v882 = vpack.c.bf16 %v872, %v871
    %v883 = vpack.c.bf16 %v874, %v873
    %v884 = vpack.c.bf16 %v876, %v875
    %v885 = vld [vmem:[#allocation10] sm:$0xf]
    %v886 = vld [vmem:[#allocation10 + $0x4] sm:$0xf]
    %v887 = vld [vmem:[#allocation10 + $0x8] sm:$0xf]
    %v888 = vld [vmem:[#allocation10 + $0xc] sm:$0xf]
    %v889 = vld [vmem:[#allocation10 + $0x10] sm:$0xf]
    %v890 = vld [vmem:[#allocation10 + $0x14] sm:$0xf]
    %v891 = vld [vmem:[#allocation10 + $0x18] sm:$0xf]
    %v892 = vld [vmem:[#allocation10 + $0x1c] sm:$0xf]
    %v893 = vld [vmem:[#allocation10 + $0x20] sm:$0xf]
    %v894 = vld [vmem:[#allocation10 + $0x24] sm:$0xf]
    %v895 = vld [vmem:[#allocation10 + $0x28] sm:$0xf]
    %v896 = vld [vmem:[#allocation10 + $0x2c] sm:$0xf]
    %v897 = vld [vmem:[#allocation10 + $0x30] sm:$0xf]
    %v898 = vld [vmem:[#allocation10 + $0x34] sm:$0xf]
    %v899 = vld [vmem:[#allocation10 + $0x38] sm:$0xf]
    %v900 = vld [vmem:[#allocation10 + $0x3c] sm:$0xf]
    %v917 = vunpack.c.l.b16 %v885
    %v918 = vunpack.c.l.b16 %v886
    %v919 = vunpack.c.l.b16 %v887
    %v920 = vunpack.c.l.b16 %v888
    %v921 = vunpack.c.l.b16 %v889
    %v922 = vunpack.c.l.b16 %v890
    %v923 = vunpack.c.l.b16 %v891
    %v924 = vunpack.c.l.b16 %v892
    %v925 = vunpack.c.l.b16 %v893
    %v926 = vunpack.c.l.b16 %v894
    %v927 = vunpack.c.l.b16 %v895
    %v928 = vunpack.c.l.b16 %v896
    %v929 = vunpack.c.l.b16 %v897
    %v930 = vunpack.c.l.b16 %v898
    %v931 = vunpack.c.l.b16 %v899
    %v932 = vunpack.c.l.b16 %v900
    %v933 = vpack.c.b16 %v918, %v917
    %v934 = vpack.c.b16 %v920, %v919
    %v935 = vpack.c.b16 %v922, %v921
    %v936 = vpack.c.b16 %v924, %v923
    %v937 = vpack.c.b16 %v926, %v925
    %v938 = vpack.c.b16 %v928, %v927
    %v939 = vpack.c.b16 %v930, %v929
    %v940 = vpack.c.b16 %v932, %v931
    %949 = vmatprep.subr.bf16.mxu0 0
    %950 = vmatpush1.bf16.msra.mxu0 %v933
    %951 = vmatprep.subr.bf16.mxu0 0
    %952 = vmatpush1.bf16.msra.mxu0 %v934
    %953 = vmatprep.subr.bf16.mxu0 0
    %954 = vmatpush1.bf16.msra.mxu0 %v935
    %955 = vmatprep.subr.bf16.mxu0 0
    %956 = vmatpush1.bf16.msra.mxu0 %v936
    %957 = vmatprep.subr.bf16.mxu0 0
    %958 = vmatpush1.bf16.msra.mxu0 %v937
    %959 = vmatprep.subr.bf16.mxu0 0
    %960 = vmatpush1.bf16.msra.mxu0 %v938
    %961 = vmatprep.subr.bf16.mxu0 0
    %962 = vmatpush1.bf16.msra.mxu0 %v939
    %963 = vmatprep.subr.bf16.mxu0 0
    %964 = vmatpush1.bf16.msra.mxu0 %v940
    %965 = vmatprep.subr.bf16.mxu0 0
    %966 = vmatpush1.bf16.msra.mxu0 0
    %967 = vmatprep.subr.bf16.mxu0 0
    %968 = vmatpush1.bf16.msra.mxu0 0
    %969 = vmatprep.subr.bf16.mxu0 0
    %970 = vmatpush1.bf16.msra.mxu0 0
    %971 = vmatprep.subr.bf16.mxu0 0
    %972 = vmatpush1.bf16.msra.mxu0 0
    %973 = vmatprep.subr.bf16.mxu0 0
    %974 = vmatpush1.bf16.msra.mxu0 0
    %975 = vmatprep.subr.bf16.mxu0 0
    %976 = vmatpush1.bf16.msra.mxu0 0
    %977 = vmatprep.subr.bf16.mxu0 0
    %978 = vmatpush1.bf16.msra.mxu0 0
    %979 = vmatprep.subr.bf16.mxu0 0
    %980 = vmatpush1.bf16.msra.mxu0 0
    %981 = vmatprep.mubr.bf16.mxu0 0
    %982 = vmatmul.mubr.bf16.gmra.mrb[0].mxu0 %v877
    %v983 = vpop.f32.mrb[0].mxu0
    %v984 = vadd.f32 0.0, %v983
    %v985 = vpop.f32.mrb[0].mxu0
    %v986 = vpop.f32.mrb[0].mxu0
    %v987 = vadd.f32 0.0, %v986
    %v988 = vpop.f32.mrb[0].mxu0
    %989 = vmatprep.mubr.bf16.mxu0 0
    %990 = vmatmul.mubr.bf16.gmra.mrb[0].mxu0 %v878
    %v991 = vpop.f32.mrb[0].mxu0
    %v992 = vadd.f32 0.0, %v991
    %v993 = vpop.f32.mrb[0].mxu0
    %v994 = vpop.f32.mrb[0].mxu0
    %v995 = vadd.f32 0.0, %v994
    %v996 = vpop.f32.mrb[0].mxu0
    %997 = vmatprep.mubr.bf16.mxu0 0
    %998 = vmatmul.mubr.bf16.gmra.mrb[0].mxu0 %v879
    %v999 = vpop.f32.mrb[0].mxu0
    %v1000 = vadd.f32 0.0, %v999
    %v1001 = vpop.f32.mrb[0].mxu0
    %v1002 = vpop.f32.mrb[0].mxu0
    %v1003 = vadd.f32 0.0, %v1002
    %v1004 = vpop.f32.mrb[0].mxu0
    %1005 = vmatprep.mubr.bf16.mxu0 0
    %1006 = vmatmul.mubr.bf16.gmra.mrb[0].mxu0 %v880
    %v1007 = vpop.f32.mrb[0].mxu0
    %v1008 = vadd.f32 0.0, %v1007
    %v1009 = vpop.f32.mrb[0].mxu0
    %v1010 = vpop.f32.mrb[0].mxu0
    %v1011 = vadd.f32 0.0, %v1010
    %v1012 = vpop.f32.mrb[0].mxu0
    %1013 = vmatprep.mubr.bf16.mxu0 0
    %1014 = vmatmul.mubr.bf16.gmra.mrb[0].mxu0 %v881
    %v1015 = vpop.f32.mrb[0].mxu0
    %v1016 = vadd.f32 0.0, %v1015
    %v1017 = vpop.f32.mrb[0].mxu0
    %v1018 = vpop.f32.mrb[0].mxu0
    %v1019 = vadd.f32 0.0, %v1018
    %v1020 = vpop.f32.mrb[0].mxu0
    %1021 = vmatprep.mubr.bf16.mxu0 0
    %1022 = vmatmul.mubr.bf16.gmra.mrb[0].mxu0 %v882
    %v1023 = vpop.f32.mrb[0].mxu0
    %v1024 = vadd.f32 0.0, %v1023
    %v1025 = vpop.f32.mrb[0].mxu0
    %v1026 = vpop.f32.mrb[0].mxu0
    %v1027 = vadd.f32 0.0, %v1026
    %v1028 = vpop.f32.mrb[0].mxu0
    %1029 = vmatprep.mubr.bf16.mxu0 0
    %1030 = vmatmul.mubr.bf16.gmra.mrb[0].mxu0 %v883
    %v1031 = vpop.f32.mrb[0].mxu0
    %v1032 = vadd.f32 0.0, %v1031
    %v1033 = vpop.f32.mrb[0].mxu0
    %v1034 = vpop.f32.mrb[0].mxu0
    %v1035 = vadd.f32 0.0, %v1034
    %v1036 = vpop.f32.mrb[0].mxu0
    %1037 = vmatprep.mubr.bf16.mxu0 0
    %1038 = vmatmul.mubr.bf16.gmra.mrb[0].mxu0 %v884
    %v1039 = vpop.f32.mrb[0].mxu0
    %v1040 = vadd.f32 0.0, %v1039
    %v1041 = vpop.f32.mrb[0].mxu0
    %v1042 = vpop.f32.mrb[0].mxu0
    %v1043 = vadd.f32 0.0, %v1042
    %v1044 = vpop.f32.mrb[0].mxu0
    %1045 = vdwg.mxu0
    %v1046 = vpack.c.bf16 %v987, %v984
    %v1047 = vpack.c.bf16 %v995, %v992
    %v1048 = vpack.c.bf16 %v1003, %v1000
    %v1049 = vpack.c.bf16 %v1011, %v1008
    %v1050 = vpack.c.bf16 %v1019, %v1016
    %v1051 = vpack.c.bf16 %v1027, %v1024
    %v1052 = vpack.c.bf16 %v1035, %v1032
    %v1053 = vpack.c.bf16 %v1043, %v1040
    %v1054 = vld [vmem:[%s7] sm:$0x1]
    %v1056 = vlaneseq
    %v1057 = vshrl.u32 %v1056, 7
    %v1058 = vsub.s32 0, %v1057
    %v1059 = vrot.slane %v1054, %v1058
    %1061 = vmatprep.subr.bf16.mxu0 0
    %1062 = vmatpush1.bf16.msra.mxu0 %v1046
    %1063 = vmatprep.subr.bf16.mxu0 0
    %1064 = vmatpush1.bf16.msra.mxu0 %v1047
    %1065 = vmatprep.subr.bf16.mxu0 0
    %1066 = vmatpush1.bf16.msra.mxu0 %v1048
    %1067 = vmatprep.subr.bf16.mxu0 0
    %1068 = vmatpush1.bf16.msra.mxu0 %v1049
    %1069 = vmatprep.subr.bf16.mxu0 0
    %1070 = vmatpush1.bf16.msra.mxu0 %v1050
    %1071 = vmatprep.subr.bf16.mxu0 0
    %1072 = vmatpush1.bf16.msra.mxu0 %v1051
    %1073 = vmatprep.subr.bf16.mxu0 0
    %1074 = vmatpush1.bf16.msra.mxu0 %v1052
    %1075 = vmatprep.subr.bf16.mxu0 0
    %1076 = vmatpush1.bf16.msra.mxu0 %v1053
    %1077 = vmatprep.subr.bf16.mxu0 0
    %1078 = vmatpush1.bf16.msra.mxu0 0
    %1079 = vmatprep.subr.bf16.mxu0 0
    %1080 = vmatpush1.bf16.msra.mxu0 0
    %1081 = vmatprep.subr.bf16.mxu0 0
    %1082 = vmatpush1.bf16.msra.mxu0 0
    %1083 = vmatprep.subr.bf16.mxu0 0
    %1084 = vmatpush1.bf16.msra.mxu0 0
    %1085 = vmatprep.subr.bf16.mxu0 0
    %1086 = vmatpush1.bf16.msra.mxu0 0
    %1087 = vmatprep.subr.bf16.mxu0 0
    %1088 = vmatpush1.bf16.msra.mxu0 0
    %1089 = vmatprep.subr.bf16.mxu0 0
    %1090 = vmatpush1.bf16.msra.mxu0 0
    %1091 = vmatprep.subr.bf16.mxu0 0
    %1092 = vmatpush1.bf16.msra.mxu0 0
    %1093 = vmatprep.mubr.bf16.mxu0 0
    %1094 = vmatmul.mubr.bf16.gmra.mrb[0].mxu0 %v387
    %v1095 = vpop.f32.mrb[0].mxu0
    %v1096 = vadd.f32 %v1059, %v1095
    %v1097 = vpop.f32.mrb[0].mxu0
    %v1098 = vpop.f32.mrb[0].mxu0
    %v1099 = vadd.f32 %v1059, %v1098
    %v1100 = vpop.f32.mrb[0].mxu0
    %1101 = vmatprep.mubr.bf16.mxu0 0
    %1102 = vmatmul.mubr.bf16.gmra.mrb[0].mxu0 %v388
    %v1103 = vpop.f32.mrb[0].mxu0
    %v1104 = vadd.f32 %v1059, %v1103
    %v1105 = vpop.f32.mrb[0].mxu0
    %v1106 = vpop.f32.mrb[0].mxu0
    %v1107 = vadd.f32 %v1059, %v1106
    %v1108 = vpop.f32.mrb[0].mxu0
    %1109 = vmatprep.mubr.bf16.mxu0 0
    %1110 = vmatmul.mubr.bf16.gmra.mrb[0].mxu0 %v389
    %v1111 = vpop.f32.mrb[0].mxu0
    %v1112 = vadd.f32 %v1059, %v1111
    %v1113 = vpop.f32.mrb[0].mxu0
    %v1114 = vpop.f32.mrb[0].mxu0
    %v1115 = vadd.f32 %v1059, %v1114
    %v1116 = vpop.f32.mrb[0].mxu0
    %1117 = vmatprep.mubr.bf16.mxu0 0
    %1118 = vmatmul.mubr.bf16.gmra.mrb[0].mxu0 %v390
    %v1119 = vpop.f32.mrb[0].mxu0
    %v1120 = vadd.f32 %v1059, %v1119
    %v1121 = vpop.f32.mrb[0].mxu0
    %v1122 = vpop.f32.mrb[0].mxu0
    %v1123 = vadd.f32 %v1059, %v1122
    %v1124 = vpop.f32.mrb[0].mxu0
    %1125 = vmatprep.mubr.bf16.mxu0 0
    %1126 = vmatmul.mubr.bf16.gmra.mrb[0].mxu0 %v391
    %v1127 = vpop.f32.mrb[0].mxu0
    %v1128 = vadd.f32 %v1059, %v1127
    %v1129 = vpop.f32.mrb[0].mxu0
    %v1130 = vpop.f32.mrb[0].mxu0
    %v1131 = vadd.f32 %v1059, %v1130
    %v1132 = vpop.f32.mrb[0].mxu0
    %1133 = vmatprep.mubr.bf16.mxu0 0
    %1134 = vmatmul.mubr.bf16.gmra.mrb[0].mxu0 %v392
    %v1135 = vpop.f32.mrb[0].mxu0
    %v1136 = vadd.f32 %v1059, %v1135
    %v1137 = vpop.f32.mrb[0].mxu0
    %v1138 = vpop.f32.mrb[0].mxu0
    %v1139 = vadd.f32 %v1059, %v1138
    %v1140 = vpop.f32.mrb[0].mxu0
    %1141 = vmatprep.mubr.bf16.mxu0 0
    %1142 = vmatmul.mubr.bf16.gmra.mrb[0].mxu0 %v393
    %v1143 = vpop.f32.mrb[0].mxu0
    %v1144 = vadd.f32 %v1059, %v1143
    %v1145 = vpop.f32.mrb[0].mxu0
    %v1146 = vpop.f32.mrb[0].mxu0
    %v1147 = vadd.f32 %v1059, %v1146
    %v1148 = vpop.f32.mrb[0].mxu0
    %1149 = vmatprep.mubr.bf16.mxu0 0
    %1150 = vmatmul.mubr.bf16.gmra.mrb[0].mxu0 %v394
    %v1151 = vpop.f32.mrb[0].mxu0
    %v1152 = vadd.f32 %v1059, %v1151
    %v1153 = vpop.f32.mrb[0].mxu0
    %v1154 = vpop.f32.mrb[0].mxu0
    %v1155 = vadd.f32 %v1059, %v1154
    %v1156 = vpop.f32.mrb[0].mxu0
    %1157 = vdwg.mxu0
    %v1158 = vlaneseq
    %v1159 = vand.u32 %v1158, 127
    %vm1160 = vcmp.lt.s32.totalorder %v1159, 8
    %v1161 = vsel %vm1160, %v1096, -1e+30
    %v1162 = vsel %vm1160, %v1099, -1e+30
    %v1163 = vsel %vm1160, %v1104, -1e+30
    %v1164 = vsel %vm1160, %v1107, -1e+30
    %v1165 = vsel %vm1160, %v1112, -1e+30
    %v1166 = vsel %vm1160, %v1115, -1e+30
    %v1167 = vsel %vm1160, %v1120, -1e+30
    %v1168 = vsel %vm1160, %v1123, -1e+30
    %v1169 = vsel %vm1160, %v1128, -1e+30
    %v1170 = vsel %vm1160, %v1131, -1e+30
    %v1171 = vsel %vm1160, %v1136, -1e+30
    %v1172 = vsel %vm1160, %v1139, -1e+30
    %v1173 = vsel %vm1160, %v1144, -1e+30
    %v1174 = vsel %vm1160, %v1147, -1e+30
    %v1175 = vsel %vm1160, %v1152, -1e+30
    %v1176 = vsel %vm1160, %v1155, -1e+30
    %1177 = vmax.xlane.f32.xlu0 %v1161
    %v1178 = vpop.xlane.xlu0 %1177
    %1179 = vmax.xlane.f32.xlu0 %v1162
    %v1180 = vpop.xlane.xlu0 %1179
    %1181 = vmax.xlane.f32.xlu0 %v1163
    %v1182 = vpop.xlane.xlu0 %1181
    %1183 = vmax.xlane.f32.xlu0 %v1164
    %v1184 = vpop.xlane.xlu0 %1183
    %1185 = vmax.xlane.f32.xlu0 %v1165
    %v1186 = vpop.xlane.xlu0 %1185
    %1187 = vmax.xlane.f32.xlu0 %v1166
    %v1188 = vpop.xlane.xlu0 %1187
    %1189 = vmax.xlane.f32.xlu0 %v1167
    %v1190 = vpop.xlane.xlu0 %1189
    %1191 = vmax.xlane.f32.xlu0 %v1168
    %v1192 = vpop.xlane.xlu0 %1191
    %1193 = vmax.xlane.f32.xlu0 %v1169
    %v1194 = vpop.xlane.xlu0 %1193
    %1195 = vmax.xlane.f32.xlu0 %v1170
    %v1196 = vpop.xlane.xlu0 %1195
    %1197 = vmax.xlane.f32.xlu0 %v1171
    %v1198 = vpop.xlane.xlu0 %1197
    %1199 = vmax.xlane.f32.xlu0 %v1172
    %v1200 = vpop.xlane.xlu0 %1199
    %1201 = vmax.xlane.f32.xlu0 %v1173
    %v1202 = vpop.xlane.xlu0 %1201
    %1203 = vmax.xlane.f32.xlu0 %v1174
    %v1204 = vpop.xlane.xlu0 %1203
    %1205 = vmax.xlane.f32.xlu0 %v1175
    %v1206 = vpop.xlane.xlu0 %1205
    %1207 = vmax.xlane.f32.xlu0 %v1176
    %v1208 = vpop.xlane.xlu0 %1207
    %v1209 = vsub.f32 %v1161, %v1178
    %v1210 = vsub.f32 %v1162, %v1180
    %v1211 = vsub.f32 %v1163, %v1182
    %v1212 = vsub.f32 %v1164, %v1184
    %v1213 = vsub.f32 %v1165, %v1186
    %v1214 = vsub.f32 %v1166, %v1188
    %v1215 = vsub.f32 %v1167, %v1190
    %v1216 = vsub.f32 %v1168, %v1192
    %v1217 = vsub.f32 %v1169, %v1194
    %v1218 = vsub.f32 %v1170, %v1196
    %v1219 = vsub.f32 %v1171, %v1198
    %v1220 = vsub.f32 %v1172, %v1200
    %v1221 = vsub.f32 %v1173, %v1202
    %v1222 = vsub.f32 %v1174, %v1204
    %v1223 = vsub.f32 %v1175, %v1206
    %v1224 = vsub.f32 %v1176, %v1208
    %v1225 = vmul.f32 %v1209, 1.442695
    %v1226 = vpow.pop %v1225
    %v1227 = vmul.f32 %v1210, 1.442695
    %v1228 = vpow.pop %v1227
    %v1229 = vmul.f32 %v1211, 1.442695
    %v1230 = vpow.pop %v1229
    %v1231 = vmul.f32 %v1212, 1.442695
    %v1232 = vpow.pop %v1231
    %v1233 = vmul.f32 %v1213, 1.442695
    %v1234 = vpow.pop %v1233
    %v1235 = vmul.f32 %v1214, 1.442695
    %v1236 = vpow.pop %v1235
    %v1237 = vmul.f32 %v1215, 1.442695
    %v1238 = vpow.pop %v1237
    %v1239 = vmul.f32 %v1216, 1.442695
    %v1240 = vpow.pop %v1239
    %v1241 = vmul.f32 %v1217, 1.442695
    %v1242 = vpow.pop %v1241
    %v1243 = vmul.f32 %v1218, 1.442695
    %v1244 = vpow.pop %v1243
    %v1245 = vmul.f32 %v1219, 1.442695
    %v1246 = vpow.pop %v1245
    %v1247 = vmul.f32 %v1220, 1.442695
    %v1248 = vpow.pop %v1247
    %v1249 = vmul.f32 %v1221, 1.442695
    %v1250 = vpow.pop %v1249
    %v1251 = vmul.f32 %v1222, 1.442695
    %v1252 = vpow.pop %v1251
    %v1253 = vmul.f32 %v1223, 1.442695
    %v1254 = vpow.pop %v1253
    %v1255 = vmul.f32 %v1224, 1.442695
    %v1256 = vpow.pop %v1255
    %v1257 = vsel %vm1160, %v1226, 0.0
    %v1258 = vsel %vm1160, %v1228, 0.0
    %v1259 = vsel %vm1160, %v1230, 0.0
    %v1260 = vsel %vm1160, %v1232, 0.0
    %v1261 = vsel %vm1160, %v1234, 0.0
    %v1262 = vsel %vm1160, %v1236, 0.0
    %v1263 = vsel %vm1160, %v1238, 0.0
    %v1264 = vsel %vm1160, %v1240, 0.0
    %v1265 = vsel %vm1160, %v1242, 0.0
    %v1266 = vsel %vm1160, %v1244, 0.0
    %v1267 = vsel %vm1160, %v1246, 0.0
    %v1268 = vsel %vm1160, %v1248, 0.0
    %v1269 = vsel %vm1160, %v1250, 0.0
    %v1270 = vsel %vm1160, %v1252, 0.0
    %v1271 = vsel %vm1160, %v1254, 0.0
    %v1272 = vsel %vm1160, %v1256, 0.0
    %1273 = vadd.xlane.f32.xlu0 %v1257
    %v1274 = vpop.xlane.xlu0 %1273
    %1275 = vadd.xlane.f32.xlu0 %v1258
    %v1276 = vpop.xlane.xlu0 %1275
    %1277 = vadd.xlane.f32.xlu0 %v1259
    %v1278 = vpop.xlane.xlu0 %1277
    %1279 = vadd.xlane.f32.xlu0 %v1260
    %v1280 = vpop.xlane.xlu0 %1279
    %1281 = vadd.xlane.f32.xlu0 %v1261
    %v1282 = vpop.xlane.xlu0 %1281
    %1283 = vadd.xlane.f32.xlu0 %v1262
    %v1284 = vpop.xlane.xlu0 %1283
    %1285 = vadd.xlane.f32.xlu0 %v1263
    %v1286 = vpop.xlane.xlu0 %1285
    %1287 = vadd.xlane.f32.xlu0 %v1264
    %v1288 = vpop.xlane.xlu0 %1287
    %1289 = vadd.xlane.f32.xlu0 %v1265
    %v1290 = vpop.xlane.xlu0 %1289
    %1291 = vadd.xlane.f32.xlu0 %v1266
    %v1292 = vpop.xlane.xlu0 %1291
    %1293 = vadd.xlane.f32.xlu0 %v1267
    %v1294 = vpop.xlane.xlu0 %1293
    %1295 = vadd.xlane.f32.xlu0 %v1268
    %v1296 = vpop.xlane.xlu0 %1295
    %1297 = vadd.xlane.f32.xlu0 %v1269
    %v1298 = vpop.xlane.xlu0 %1297
    %1299 = vadd.xlane.f32.xlu0 %v1270
    %v1300 = vpop.xlane.xlu0 %1299
    %1301 = vadd.xlane.f32.xlu0 %v1271
    %v1302 = vpop.xlane.xlu0 %1301
    %1303 = vadd.xlane.f32.xlu0 %v1272
    %v1304 = vpop.xlane.xlu0 %1303
    %v1305 = vlog2.pop %v1274
    %v1306 = vmul.f32 %v1305, 0.6931472
    %v1307 = vlog2.pop %v1276
    %v1308 = vmul.f32 %v1307, 0.6931472
    %v1309 = vlog2.pop %v1278
    %v1310 = vmul.f32 %v1309, 0.6931472
    %v1311 = vlog2.pop %v1280
    %v1312 = vmul.f32 %v1311, 0.6931472
    %v1313 = vlog2.pop %v1282
    %v1314 = vmul.f32 %v1313, 0.6931472
    %v1315 = vlog2.pop %v1284
    %v1316 = vmul.f32 %v1315, 0.6931472
    %v1317 = vlog2.pop %v1286
    %v1318 = vmul.f32 %v1317, 0.6931472
    %v1319 = vlog2.pop %v1288
    %v1320 = vmul.f32 %v1319, 0.6931472
    %v1321 = vlog2.pop %v1290
    %v1322 = vmul.f32 %v1321, 0.6931472
    %v1323 = vlog2.pop %v1292
    %v1324 = vmul.f32 %v1323, 0.6931472
    %v1325 = vlog2.pop %v1294
    %v1326 = vmul.f32 %v1325, 0.6931472
    %v1327 = vlog2.pop %v1296
    %v1328 = vmul.f32 %v1327, 0.6931472
    %v1329 = vlog2.pop %v1298
    %v1330 = vmul.f32 %v1329, 0.6931472
    %v1331 = vlog2.pop %v1300
    %v1332 = vmul.f32 %v1331, 0.6931472
    %v1333 = vlog2.pop %v1302
    %v1334 = vmul.f32 %v1333, 0.6931472
    %v1335 = vlog2.pop %v1304
    %v1336 = vmul.f32 %v1335, 0.6931472
    %v1337 = vsub.f32 %v1209, %v1306
    %v1338 = vsub.f32 %v1210, %v1308
    %v1339 = vsub.f32 %v1211, %v1310
    %v1340 = vsub.f32 %v1212, %v1312
    %v1341 = vsub.f32 %v1213, %v1314
    %v1342 = vsub.f32 %v1214, %v1316
    %v1343 = vsub.f32 %v1215, %v1318
    %v1344 = vsub.f32 %v1216, %v1320
    %v1345 = vsub.f32 %v1217, %v1322
    %v1346 = vsub.f32 %v1218, %v1324
    %v1347 = vsub.f32 %v1219, %v1326
    %v1348 = vsub.f32 %v1220, %v1328
    %v1349 = vsub.f32 %v1221, %v1330
    %v1350 = vsub.f32 %v1222, %v1332
    %v1351 = vsub.f32 %v1223, %v1334
    %v1352 = vsub.f32 %v1224, %v1336
    %1353 = vst [vmem:[#allocation11] sm:$0xff] %v1337
    %1354 = vst [vmem:[#allocation11 + $0x8] sm:$0xff] %v1338
    %1355 = vst [vmem:[#allocation11 + $0x10] sm:$0xff] %v1339
    %1356 = vst [vmem:[#allocation11 + $0x18] sm:$0xff] %v1340
    %1357 = vst [vmem:[#allocation11 + $0x20] sm:$0xff] %v1341
    %1358 = vst [vmem:[#allocation11 + $0x28] sm:$0xff] %v1342
    %1359 = vst [vmem:[#allocation11 + $0x30] sm:$0xff] %v1343
    %1360 = vst [vmem:[#allocation11 + $0x38] sm:$0xff] %v1344
    %1361 = vst [vmem:[#allocation11 + $0x40] sm:$0xff] %v1345
    %1362 = vst [vmem:[#allocation11 + $0x48] sm:$0xff] %v1346
    %1363 = vst [vmem:[#allocation11 + $0x50] sm:$0xff] %v1347
    %1364 = vst [vmem:[#allocation11 + $0x58] sm:$0xff] %v1348
    %1365 = vst [vmem:[#allocation11 + $0x60] sm:$0xff] %v1349
    %1366 = vst [vmem:[#allocation11 + $0x68] sm:$0xff] %v1350
    %1367 = vst [vmem:[#allocation11 + $0x70] sm:$0xff] %v1351
    %1368 = vst [vmem:[#allocation11 + $0x78] sm:$0xff] %v1352
    // Predicated region
    $region54: #{tpu_custom_call.1} parent=1 // pred_check
      _
    $region55: #{tpu_custom_call.1} parent=1 // pred_check_branch
      %1370 = sbr.rel (0) target = $region57
    $region56: #{tpu_custom_call.1} parent=1 // pred_region
      %s1372 = ssub.s32 2048, 2048
      %1373 = vsyncadd [#allocation4], %s1372
      %s1374 = sshll.u32 [#allocation11], 4
      %s1375 = int_to_ptr.vmem [resolvable:$true] %s1374
      %1380 = dma.vmem_to_hbm [thread:$0]  %s1375, 2048, %s8, [#allocation4], 128, 128, 8
    $region57: #{tpu_custom_call.1} parent=1 // pred_fallthru
      _
    // Predicated region
    $region58: #{tpu_custom_call.1} parent=1 // pred_check
      _
    $region59: #{tpu_custom_call.1} parent=1 // pred_check_branch
      %1382 = sbr.rel (0) target = $region61
    $region60: #{tpu_custom_call.1} parent=1 // pred_region
      %1383 = dma.done [#allocation4], 2048
    $region61: #{tpu_custom_call.1} parent=1 // pred_fallthru
      _
    %1384 = vsyncpa [#allocation3], 1
    %1385 = vsyncpa [#allocation6], 1
    %1386 = vsyncpa [#allocation9], 1
    %1387 = vsyncpa [#allocation4], 1

</llo_original>
